<compile_context>
chip_gen: v7x
topology: tpu7x:2x2x1
jax: 0.10.0
libtpu: 0.0.40
codegen_flags: <defaults>
</compile_context>

<pallas_src>
import jax
import jax.numpy as jnp
from jax.experimental import pallas as pl
from jax.experimental.pallas import tpu as pltpu


# ----------------------------------------------------------------------------
# Fused kernel: seq attention + block-diagonal dep-graph attention, one batch
# tile (BT batch rows) per grid step.
# ----------------------------------------------------------------------------
def _structured_attention_kernel(hs_ref, em_ref, sm_ref,
                                 seq_wqkv_ref, seq_wo_ref,
                                 dep_wq_ref, dep_wkv_ref, dep_wo_ref,
                                 o_ref):
    # hs_ref : (BT, S, L*H) native dtype, lane-dense hidden states
    # em_ref : (BT, S, 1)   f32 event mask (query / output rows)
    # sm_ref : (BT, 1, S)   f32 seq attention mask (key columns)
    # weights: bf16 packed  seq (H,3H)+(H,H); dep (H,H)+(H,2H)+(H,H)
    # o_ref  : (BT, S, L*H) input dtype, lane-dense output
    BT, S, LH = hs_ref.shape
    H = seq_wo_ref.shape[0]
    L = LH // H
    N = BT * S
    f32 = jnp.float32
    bf16 = jnp.bfloat16
    NEG = f32(-1e9)
    scale = 1.0 / float(H) ** 0.5

    # fold the batch tile into rows n = b*S + s (sublane concat; free when S%8==0)
    hs2 = jnp.concatenate([hs_ref[b] for b in range(BT)], axis=0)        # (N, L*H)
    row_keep = jnp.concatenate([em_ref[b] for b in range(BT)], axis=0)   # (N, 1)

    # ---- dep-graph bulk projections (chain positions 1..L-1) ----------------
    # data-independent of the seq stage -> schedulable alongside the seq softmax
    # element-major rows: row p*N + n  <->  chain n, dep-graph element p
    if L > 1:
        bulk = jnp.concatenate(
            [hs2[:, p * H:(p + 1) * H] for p in range(L - 1)],
            axis=0).astype(bf16)                                         # ((L-1)N, H)
        kv_bulk = jnp.dot(bulk, dep_wkv_ref[...],
                          preferred_element_type=f32)                    # ((L-1)N, 2H)
        q_bulk = jnp.dot(bulk, dep_wq_ref[...],
                         preferred_element_type=f32)                     # ((L-1)N, H)

    # ---- sequence module: causal self-attn over pooled per-event embeddings -
    x = hs2[:, (L - 1) * H:].astype(f32) * row_keep                      # (N, H)
    qkv = jnp.dot(x.astype(bf16), seq_wqkv_ref[...],
                  preferred_element_type=f32)                            # (N, 3H)
    r = jax.lax.broadcasted_iota(jnp.int32, (S, S), 0)
    c = jax.lax.broadcasted_iota(jnp.int32, (S, S), 1)
    causal = r >= c
    ctx_list = []
    for b in range(BT):
        qkv_b = qkv[b * S:(b + 1) * S, :]
        q = qkv_b[:, :H]
        k = qkv_b[:, H:2 * H]
        v = qkv_b[:, 2 * H:]
        s = jnp.einsum("qd,kd->qk", q.astype(bf16), k.astype(bf16),
                       preferred_element_type=f32) * scale               # (S, S)
        s = jnp.where(causal & (sm_ref[b] > 0.5), s, NEG)
        s = s - jnp.max(s, axis=-1, keepdims=True)
        e = jnp.exp(s)
        probs = e * pl.reciprocal(jnp.sum(e, axis=-1, keepdims=True), approx=True)
        ctx_list.append(jnp.dot(probs.astype(bf16), v.astype(bf16),
                                preferred_element_type=f32))             # (S, H)
    ctx = jnp.concatenate(ctx_list, axis=0)                              # (N, H)
    ctx = jnp.dot(ctx.astype(bf16), seq_wo_ref[...],
                  preferred_element_type=f32)
    ctx = ctx * row_keep                                                 # zero padded events

    # ---- history shift: hist[n] = ctx[n-1], zero at each batch start (XLU) --
    hist = pltpu.roll(ctx, shift=1, axis=0)
    ridx = jax.lax.broadcasted_iota(jnp.int32, (N, 1), 0)
    hist = jnp.where(ridx % S == 0, f32(0.0), hist)

    # ---- projections for the seq-dependent chain slots (pos 0=hist, pos L=ctx)
    hc = jnp.concatenate([hist, ctx], axis=0).astype(bf16)               # (2N, H)
    kv_hc = jnp.dot(hc, dep_wkv_ref[...], preferred_element_type=f32)    # (2N, 2H)
    q_ctx = jnp.dot(ctx.astype(bf16), dep_wq_ref[...],
                    preferred_element_type=f32)                          # (N, H)

    # per-chain-position K/V (positions 0..L) and Q (positions 1..L), all (N, H)
    ks = [kv_hc[:N, :H]]
    vs = [kv_hc[:N, H:]]
    qs = []
    for p in range(L - 1):
        ks.append(kv_bulk[p * N:(p + 1) * N, :H])
        vs.append(kv_bulk[p * N:(p + 1) * N, H:])
        qs.append(q_bulk[p * N:(p + 1) * N, :])
    ks.append(kv_hc[N:, :H])
    vs.append(kv_hc[N:, H:])
    qs.append(q_ctx)

    # ---- block-diagonal dep-graph attention, unrolled over chain positions --
    # query at chain position p (1..L) attends keys 0..p of its own chain only,
    # so only the valid score/prob entries are ever computed (no dense mask).
    outs = []
    for p in range(1, L + 1):
        qp = qs[p - 1] * scale
        cols = [jnp.sum(qp * ks[j], axis=-1, keepdims=True)
                for j in range(p + 1)]                                   # (N, 1) each
        sp = jnp.concatenate(cols, axis=-1)                              # (N, p+1)
        sp = sp - jnp.max(sp, axis=-1, keepdims=True)
        ep = jnp.exp(sp)
        wp = ep * pl.reciprocal(jnp.sum(ep, axis=-1, keepdims=True), approx=True)
        acc = wp[:, 0:1] * vs[0]
        for j in range(1, p + 1):
            acc = acc + wp[:, j:j + 1] * vs[j]
        outs.append(acc)                                                 # (N, H)

    # fold the L output projections into one matmul (M = L*N), element-major rows
    do = jnp.dot(jnp.concatenate(outs, axis=0).astype(bf16), dep_wo_ref[...],
                 preferred_element_type=f32)                             # (L*N, H)

    # ---- lane-dense output: lanes [l*H:(l+1)*H] = dep-graph element l -------
    out = jnp.concatenate([do[l * N:(l + 1) * N, :] for l in range(L)], axis=-1)
    out = out * row_keep                                                 # zero padded events
    for b in range(BT):
        o_ref[b] = out[b * S:(b + 1) * S, :].astype(o_ref.dtype)


def _pick_b_tile(batch, seq_len, dep_graph_len):
    """Fold several batch rows into one grid step: raise projection M toward the
    MXU tile (~256) and amortise per-step overhead, while keeping >=2 parallel
    grid steps when the batch allows it (v7x has 2 TensorCores)."""
    per_b = (dep_graph_len + 1) * seq_len
    best = 1
    for cand in range(2, batch + 1):
        if batch % cand:
            continue
        if cand * per_b > 512:
            break
        if batch // cand < 2:
            continue
        best = cand
    return best


# ----------------------------------------------------------------------------
# StructuredAttention.forward (prepend_graph_with_history_embeddings=True,
#                              update_last_graph_el_to_history_embedding=True)
# ----------------------------------------------------------------------------
@jax.jit
def structured_attention_forward(hidden_states, seq_attention_mask, event_mask,
                                 seq_params, dep_params):
    B, S, L, H = hidden_states.shape
    LH = L * H
    b_tile = _pick_b_tile(B, S, L)

    # free reshapes only; hidden states stay in their native dtype (no HBM pass)
    hs_flat = hidden_states.reshape(B, S, LH)
    em_row = (event_mask > 0.5).astype(jnp.float32).reshape(B, S, 1)
    sm_col = (seq_attention_mask > 0.5).astype(jnp.float32).reshape(B, 1, S)

    seq_wqkv = seq_params["wqkv"].astype(jnp.bfloat16)      # (H, 3H)
    seq_wo = seq_params["wo"].astype(jnp.bfloat16)          # (H, H)
    dep_wq = dep_params["wqkv"][:, :H].astype(jnp.bfloat16)   # (H, H)
    dep_wkv = dep_params["wqkv"][:, H:].astype(jnp.bfloat16)  # (H, 2H)
    dep_wo = dep_params["wo"].astype(jnp.bfloat16)            # (H, H)

    out_flat = pl.pallas_call(
        _structured_attention_kernel,
        out_shape=jax.ShapeDtypeStruct((B, S, LH), hidden_states.dtype),
        grid=(B // b_tile,),
        in_specs=[
            pl.BlockSpec((b_tile, S, LH), lambda b: (b, 0, 0)),
            pl.BlockSpec((b_tile, S, 1), lambda b: (b, 0, 0)),
            pl.BlockSpec((b_tile, 1, S), lambda b: (b, 0, 0)),
            # weights are constant across grid steps (index (0,0)); single-
            # buffering them (pipeline_mode=pl.Buffered(1)) would halve their
            # VMEM footprint at large H -- left at the default here.
            pl.BlockSpec((H, 3 * H), lambda b: (0, 0)),
            pl.BlockSpec((H, H), lambda b: (0, 0)),
            pl.BlockSpec((H, H), lambda b: (0, 0)),
            pl.BlockSpec((H, 2 * H), lambda b: (0, 0)),
            pl.BlockSpec((H, H), lambda b: (0, 0)),
        ],
        out_specs=pl.BlockSpec((b_tile, S, LH), lambda b: (b, 0, 0)),
        compiler_params=pltpu.CompilerParams(
            dimension_semantics=("parallel",)),
    )(hs_flat, em_row, sm_col, seq_wqkv, seq_wo, dep_wq, dep_wkv, dep_wo)

    dep_graph_all = out_flat.reshape(B, S, L, H)
    extra_return_kwargs = {"seq_module": None, "dep_graph_module": None}
    return dep_graph_all, extra_return_kwargs


# ----------------------------------------------------------------------------
# Pure-JAX f32 reference (same attention stand-ins, no Pallas, no bf16)
# ----------------------------------------------------------------------------
def _reference_forward(hidden_states, seq_attention_mask, event_mask,
                       seq_params, dep_params):
    B, S, L, H = hidden_states.shape
    em = (event_mask > 0.5).astype(jnp.float32)[..., None]              # (B,S,1)
    x = hidden_states[:, :, -1, :] * em

    qkv = x @ seq_params["wqkv"]
    q, k, v = qkv[..., :H], qkv[..., H:2 * H], qkv[..., 2 * H:]
    s = jnp.einsum("bqd,bkd->bqk", q, k) / jnp.sqrt(jnp.float32(H))
    causal = jnp.tril(jnp.ones((S, S), bool))
    kmask = seq_attention_mask[:, None, :] > 0.5
    s = jnp.where(causal[None] & kmask, s, -1e9)
    p = jax.nn.softmax(s, axis=-1)
    ctx = jnp.einsum("bqk,bkd->bqd", p, v) @ seq_params["wo"]
    ctx = ctx * em

    hist = jnp.concatenate([jnp.zeros_like(ctx[:, :1]), ctx[:, :-1]], axis=1)
    chain = jnp.concatenate([hist[:, :, None, :], hidden_states], axis=2)
    chain = chain.at[:, :, -1, :].set(ctx)                              # (B,S,L+1,H)

    qkv = chain @ dep_params["wqkv"]
    dq = qkv[:, :, 1:, :H]
    dk = qkv[..., H:2 * H]
    dv = qkv[..., 2 * H:]
    s = jnp.einsum("bsqd,bskd->bsqk", dq, dk) / jnp.sqrt(jnp.float32(H))
    rows = jnp.arange(L)[:, None]
    cols = jnp.arange(L + 1)[None, :]
    s = jnp.where((cols <= rows + 1)[None, None], s, -1e9)
    p = jax.nn.softmax(s, axis=-1)
    out = jnp.einsum("bsqk,bskd->bsqd", p, dv) @ dep_params["wo"]
    return out * em[..., None]


def _init_attn_params(key, hidden_size):
    ks = jax.random.split(key, 4)
    scale = 1.0 / jnp.sqrt(jnp.float32(hidden_size))
    wq, wk, wv, wo = [
        jax.random.normal(k, (hidden_size, hidden_size), jnp.float32) * scale
        for k in ks
    ]
    return {"wqkv": jnp.concatenate([wq, wk, wv], axis=1), "wo": wo}


if __name__ == "__main__":
    bsz, seq_len, dep_graph_len, hidden_size = 2, 8, 4, 32

    root = jax.random.PRNGKey(0)
    k_hs, k_seq, k_dep = jax.random.split(root, 3)

    hidden_states = jax.random.normal(
        k_hs, (bsz, seq_len, dep_graph_len, hidden_size), jnp.float32)
    # event mask: last event of each sequence is padding
    event_mask = jnp.ones((bsz, seq_len), jnp.float32).at[:, -1].set(0.0)
    seq_attention_mask = event_mask  # key-padding mask for the sequence module

    seq_params = _init_attn_params(k_seq, hidden_size)
    dep_params = _init_attn_params(k_dep, hidden_size)

    out, extras = structured_attention_forward(
        hidden_states, seq_attention_mask, event_mask, seq_params, dep_params)
    out = jax.block_until_ready(out)

    assert out.shape == (bsz, seq_len, dep_graph_len, hidden_size)
    assert bool(jnp.all(jnp.isfinite(out)))
    # masked (padding) events must be zero in the output
    assert bool(jnp.all(out[:, -1, :, :] == 0.0))

    ref = _reference_forward(hidden_states, seq_attention_mask, event_mask,
                             seq_params, dep_params)
    max_err = float(jnp.max(jnp.abs(out - ref)))
    assert max_err < 0.1, f"max abs error vs f32 reference: {max_err}"

    print("KERNEL_OK")
</pallas_src>

<mosaic_0001>
module attributes {stable_mosaic.version = 11 : i64} {
  func.func @_structured_attention_kernel(%arg0: i32, %arg1: memref<1x8x128xf32, #tpu.memory_space<vmem>>, %arg2: memref<1x8x1xf32, #tpu.memory_space<vmem>>, %arg3: memref<1x1x8xf32, #tpu.memory_space<vmem>>, %arg4: memref<32x96xbf16, #tpu.memory_space<vmem>>, %arg5: memref<32x32xbf16, #tpu.memory_space<vmem>>, %arg6: memref<32x32xbf16, #tpu.memory_space<vmem>>, %arg7: memref<32x64xbf16, #tpu.memory_space<vmem>>, %arg8: memref<32x32xbf16, #tpu.memory_space<vmem>>, %arg9: memref<1x8x128xf32, #tpu.memory_space<vmem>>) attributes {dimension_semantics = [#tpu.dimension_semantics<parallel>], iteration_bounds = array<i64: 2>, scalar_prefetch = 0 : i64, scratch_operands = 0 : i64, tpu.core_type = #tpu.core_type<tc>, window_params = [{transform_indices = @transform_0, window_bounds = array<i64: 1, 8, 128>}, {transform_indices = @transform_1, window_bounds = array<i64: 1, 8, 1>}, {transform_indices = @transform_2, window_bounds = array<i64: 1, 1, 8>}, {pipeline_mode = #tpu.pipeline_mode<synchronous>, transform_indices = @transform_3, window_bounds = array<i64: 32, 96>}, {pipeline_mode = #tpu.pipeline_mode<synchronous>, transform_indices = @transform_4, window_bounds = array<i64: 32, 32>}, {pipeline_mode = #tpu.pipeline_mode<synchronous>, transform_indices = @transform_5, window_bounds = array<i64: 32, 32>}, {pipeline_mode = #tpu.pipeline_mode<synchronous>, transform_indices = @transform_6, window_bounds = array<i64: 32, 64>}, {pipeline_mode = #tpu.pipeline_mode<synchronous>, transform_indices = @transform_7, window_bounds = array<i64: 32, 32>}, {transform_indices = @transform_8, window_bounds = array<i64: 1, 8, 128>}]} {
    %c0 = arith.constant 0 : index
    %c0_0 = arith.constant 0 : index
    %c0_1 = arith.constant 0 : index
    %0 = vector.load %arg1[%c0, %c0_0, %c0_1] : memref<1x8x128xf32, #tpu.memory_space<vmem>>, vector<1x8x128xf32>
    %1 = vector.shape_cast %0 : vector<1x8x128xf32> to vector<8x128xf32>
    %c0_2 = arith.constant 0 : index
    %c0_3 = arith.constant 0 : index
    %c0_4 = arith.constant 0 : index
    %2 = vector.load %arg2[%c0_2, %c0_3, %c0_4] : memref<1x8x1xf32, #tpu.memory_space<vmem>>, vector<1x8x1xf32>
    %3 = vector.shape_cast %2 : vector<1x8x1xf32> to vector<8x1xf32>
    %4 = vector.extract_strided_slice %1 {offsets = [0, 0], sizes = [8, 32], strides = [1, 1]} : vector<8x128xf32> to vector<8x32xf32>
    %5 = vector.extract_strided_slice %1 {offsets = [0, 32], sizes = [8, 32], strides = [1, 1]} : vector<8x128xf32> to vector<8x32xf32>
    %6 = vector.extract_strided_slice %1 {offsets = [0, 64], sizes = [8, 32], strides = [1, 1]} : vector<8x128xf32> to vector<8x32xf32>
    %7 = tpu.concatenate %4, %5, %6 in 0 : vector<8x32xf32>, vector<8x32xf32>, vector<8x32xf32> -> vector<24x32xf32>
    %8 = arith.truncf %7 : vector<24x32xf32> to vector<24x32xbf16>
    %c0_5 = arith.constant 0 : index
    %c0_6 = arith.constant 0 : index
    %9 = vector.load %arg7[%c0_5, %c0_6] : memref<32x64xbf16, #tpu.memory_space<vmem>>, vector<32x64xbf16>
    %cst = arith.constant dense<0.000000e+00> : vector<24x64xf32>
    %10 = tpu.matmul %8, %9, %cst {dimension_numbers = #tpu.dot_dimension_numbers<[1], [0], [0], [1], [0, 0, 1, 1], [], []>} : vector<24x32xbf16>, vector<32x64xbf16>, vector<24x64xf32> -> vector<24x64xf32>
    %c0_7 = arith.constant 0 : index
    %c0_8 = arith.constant 0 : index
    %11 = vector.load %arg6[%c0_7, %c0_8] : memref<32x32xbf16, #tpu.memory_space<vmem>>, vector<32x32xbf16>
    %cst_9 = arith.constant dense<0.000000e+00> : vector<24x32xf32>
    %12 = tpu.matmul %8, %11, %cst_9 {dimension_numbers = #tpu.dot_dimension_numbers<[1], [0], [0], [1], [0, 0, 1, 1], [], []>} : vector<24x32xbf16>, vector<32x32xbf16>, vector<24x32xf32> -> vector<24x32xf32>
    %13 = vector.extract_strided_slice %1 {offsets = [0, 96], sizes = [8, 32], strides = [1, 1]} : vector<8x128xf32> to vector<8x32xf32>
    %14 = vector.broadcast %3 : vector<8x1xf32> to vector<8x32xf32>
    %15 = arith.mulf %13, %14 : vector<8x32xf32>
    %16 = arith.truncf %15 : vector<8x32xf32> to vector<8x32xbf16>
    %c0_10 = arith.constant 0 : index
    %c0_11 = arith.constant 0 : index
    %17 = vector.load %arg4[%c0_10, %c0_11] : memref<32x96xbf16, #tpu.memory_space<vmem>>, vector<32x96xbf16>
    %cst_12 = arith.constant dense<0.000000e+00> : vector<8x96xf32>
    %18 = tpu.matmul %16, %17, %cst_12 {dimension_numbers = #tpu.dot_dimension_numbers<[1], [0], [0], [1], [0, 0, 1, 1], [], []>} : vector<8x32xbf16>, vector<32x96xbf16>, vector<8x96xf32> -> vector<8x96xf32>
    %19 = tpu.iota {dimensions = array<i32: 0>} : vector<8x8xi32>
    %20 = tpu.iota {dimensions = array<i32: 1>} : vector<8x8xi32>
    %21 = arith.cmpi sge, %19, %20 : vector<8x8xi32>
    %22 = vector.extract_strided_slice %18 {offsets = [0, 0], sizes = [8, 32], strides = [1, 1]} : vector<8x96xf32> to vector<8x32xf32>
    %23 = vector.extract_strided_slice %18 {offsets = [0, 32], sizes = [8, 32], strides = [1, 1]} : vector<8x96xf32> to vector<8x32xf32>
    %24 = vector.extract_strided_slice %18 {offsets = [0, 64], sizes = [8, 32], strides = [1, 1]} : vector<8x96xf32> to vector<8x32xf32>
    %25 = arith.truncf %22 : vector<8x32xf32> to vector<8x32xbf16>
    %26 = arith.truncf %23 : vector<8x32xf32> to vector<8x32xbf16>
    "tpu.trace_start"() <{level = 10 : i32, message = "qd,kd->qk"}> : () -> ()
    %cst_13 = arith.constant dense<0.000000e+00> : vector<8x8xf32>
    %27 = tpu.matmul %25, %26, %cst_13 {dimension_numbers = #tpu.dot_dimension_numbers<[1], [1], [0], [0], [0, 0, 1, 0], [], []>} : vector<8x32xbf16>, vector<8x32xbf16>, vector<8x8xf32> -> vector<8x8xf32>
    "tpu.trace_stop"() : () -> ()
    %cst_14 = arith.constant 0.176776692 : f32
    %28 = vector.broadcast %cst_14 : f32 to vector<8x8xf32>
    %29 = arith.mulf %27, %28 : vector<8x8xf32>
    %c0_15 = arith.constant 0 : index
    %c0_16 = arith.constant 0 : index
    %c0_17 = arith.constant 0 : index
    %30 = vector.load %arg3[%c0_15, %c0_16, %c0_17] : memref<1x1x8xf32, #tpu.memory_space<vmem>>, vector<1x1x8xf32>
    %31 = vector.shape_cast %30 : vector<1x1x8xf32> to vector<1x8xf32>
    %cst_18 = arith.constant 5.000000e-01 : f32
    %32 = vector.broadcast %cst_18 : f32 to vector<1x8xf32>
    %33 = arith.cmpf ogt, %31, %32 : vector<1x8xf32>
    %34 = vector.broadcast %33 : vector<1x8xi1> to vector<8x8xi1>
    %35 = arith.andi %21, %34 : vector<8x8xi1>
    %cst_19 = arith.constant -1.000000e+09 : f32
    %36 = vector.broadcast %cst_19 : f32 to vector<8x8xf32>
    %37 = arith.select %35, %29, %36 : vector<8x8xi1>, vector<8x8xf32>
    %cst_20 = arith.constant dense<0xFF800000> : vector<8xf32>
    %38 = vector.multi_reduction <maximumf>, %37, %cst_20 [1] : vector<8x8xf32> to vector<8xf32>
    %39 = vector.shape_cast %38 : vector<8xf32> to vector<8x1xf32>
    %40 = vector.broadcast %39 : vector<8x1xf32> to vector<8x8xf32>
    %41 = arith.subf %37, %40 : vector<8x8xf32>
    %42 = math.exp %41 : vector<8x8xf32>
    %cst_21 = arith.constant dense<0.000000e+00> : vector<8xf32>
    %43 = vector.multi_reduction <add>, %42, %cst_21 [1] : vector<8x8xf32> to vector<8xf32>
    %44 = vector.shape_cast %43 : vector<8xf32> to vector<8x1xf32>
    %45 = tpu.reciprocal %44 {approx = true} : vector<8x1xf32> -> vector<8x1xf32>
    %46 = vector.broadcast %45 : vector<8x1xf32> to vector<8x8xf32>
    %47 = arith.mulf %42, %46 : vector<8x8xf32>
    %48 = arith.truncf %47 : vector<8x8xf32> to vector<8x8xbf16>
    %49 = arith.truncf %24 : vector<8x32xf32> to vector<8x32xbf16>
    %cst_22 = arith.constant dense<0.000000e+00> : vector<8x32xf32>
    %50 = tpu.matmul %48, %49, %cst_22 {dimension_numbers = #tpu.dot_dimension_numbers<[1], [0], [0], [1], [0, 0, 1, 1], [], []>} : vector<8x8xbf16>, vector<8x32xbf16>, vector<8x32xf32> -> vector<8x32xf32>
    %51 = arith.truncf %50 : vector<8x32xf32> to vector<8x32xbf16>
    %c0_23 = arith.constant 0 : index
    %c0_24 = arith.constant 0 : index
    %52 = vector.load %arg5[%c0_23, %c0_24] : memref<32x32xbf16, #tpu.memory_space<vmem>>, vector<32x32xbf16>
    %cst_25 = arith.constant dense<0.000000e+00> : vector<8x32xf32>
    %53 = tpu.matmul %51, %52, %cst_25 {dimension_numbers = #tpu.dot_dimension_numbers<[1], [0], [0], [1], [0, 0, 1, 1], [], []>} : vector<8x32xbf16>, vector<32x32xbf16>, vector<8x32xf32> -> vector<8x32xf32>
    %54 = vector.broadcast %3 : vector<8x1xf32> to vector<8x32xf32>
    %55 = arith.mulf %53, %54 : vector<8x32xf32>
    %c1_i32 = arith.constant 1 : i32
    %56 = tpu.dynamic_rotate %55 by %c1_i32 dim 0 : vector<8x32xf32>, i32 -> vector<8x32xf32>
    %57 = tpu.iota {dimensions = array<i32: 0>} : vector<8x1xi32>
    %c8_i32 = arith.constant 8 : i32
    %c0_i32 = arith.constant 0 : i32
    %58 = arith.cmpi eq, %c8_i32, %c0_i32 : i32
    %c1_i32_26 = arith.constant 1 : i32
    %59 = arith.select %58, %c1_i32_26, %c8_i32 : i32
    %60 = vector.broadcast %59 : i32 to vector<8x1xi32>
    %61 = arith.remsi %57, %60 : vector<8x1xi32>
    %c0_i32_27 = arith.constant 0 : i32
    %62 = vector.broadcast %c0_i32_27 : i32 to vector<8x1xi32>
    %63 = arith.cmpi ne, %61, %62 : vector<8x1xi32>
    %c0_i32_28 = arith.constant 0 : i32
    %64 = vector.broadcast %c0_i32_28 : i32 to vector<8x1xi32>
    %65 = arith.cmpi slt, %61, %64 : vector<8x1xi32>
    %c0_i32_29 = arith.constant 0 : i32
    %66 = arith.cmpi slt, %59, %c0_i32_29 : i32
    %67 = vector.broadcast %66 : i1 to vector<8x1xi1>
    %68 = vector.broadcast %67 : vector<8x1xi1> to vector<8x1xi1>
    %69 = arith.xori %65, %68 : vector<8x1xi1>
    %70 = arith.andi %69, %63 : vector<8x1xi1>
    %71 = vector.broadcast %59 : i32 to vector<8x1xi32>
    %72 = arith.addi %61, %71 : vector<8x1xi32>
    %73 = arith.select %70, %72, %61 : vector<8x1xi1>, vector<8x1xi32>
    %c0_i32_30 = arith.constant 0 : i32
    %74 = vector.broadcast %c0_i32_30 : i32 to vector<8x1xi32>
    %75 = arith.cmpi eq, %73, %74 : vector<8x1xi32>
    %cst_31 = arith.constant 0.000000e+00 : f32
    %76 = vector.shape_cast %75 : vector<8x1xi1> to vector<8x1xi1>
    %77 = vector.broadcast %76 : vector<8x1xi1> to vector<8x32xi1>
    %78 = vector.broadcast %cst_31 : f32 to vector<8x32xf32>
    %79 = arith.select %77, %78, %56 : vector<8x32xi1>, vector<8x32xf32>
    %80 = tpu.concatenate %79, %55 in 0 : vector<8x32xf32>, vector<8x32xf32> -> vector<16x32xf32>
    %81 = arith.truncf %80 : vector<16x32xf32> to vector<16x32xbf16>
    %c0_32 = arith.constant 0 : index
    %c0_33 = arith.constant 0 : index
    %82 = vector.load %arg7[%c0_32, %c0_33] : memref<32x64xbf16, #tpu.memory_space<vmem>>, vector<32x64xbf16>
    %cst_34 = arith.constant dense<0.000000e+00> : vector<16x64xf32>
    %83 = tpu.matmul %81, %82, %cst_34 {dimension_numbers = #tpu.dot_dimension_numbers<[1], [0], [0], [1], [0, 0, 1, 1], [], []>} : vector<16x32xbf16>, vector<32x64xbf16>, vector<16x64xf32> -> vector<16x64xf32>
    %84 = arith.truncf %55 : vector<8x32xf32> to vector<8x32xbf16>
    %c0_35 = arith.constant 0 : index
    %c0_36 = arith.constant 0 : index
    %85 = vector.load %arg6[%c0_35, %c0_36] : memref<32x32xbf16, #tpu.memory_space<vmem>>, vector<32x32xbf16>
    %cst_37 = arith.constant dense<0.000000e+00> : vector<8x32xf32>
    %86 = tpu.matmul %84, %85, %cst_37 {dimension_numbers = #tpu.dot_dimension_numbers<[1], [0], [0], [1], [0, 0, 1, 1], [], []>} : vector<8x32xbf16>, vector<32x32xbf16>, vector<8x32xf32> -> vector<8x32xf32>
    %87 = vector.extract_strided_slice %83 {offsets = [0, 0], sizes = [8, 32], strides = [1, 1]} : vector<16x64xf32> to vector<8x32xf32>
    %88 = vector.extract_strided_slice %83 {offsets = [0, 32], sizes = [8, 32], strides = [1, 1]} : vector<16x64xf32> to vector<8x32xf32>
    %89 = vector.extract_strided_slice %10 {offsets = [0, 0], sizes = [8, 32], strides = [1, 1]} : vector<24x64xf32> to vector<8x32xf32>
    %90 = vector.extract_strided_slice %10 {offsets = [0, 32], sizes = [8, 32], strides = [1, 1]} : vector<24x64xf32> to vector<8x32xf32>
    %91 = vector.extract_strided_slice %12 {offsets = [0, 0], sizes = [8, 32], strides = [1, 1]} : vector<24x32xf32> to vector<8x32xf32>
    %92 = vector.extract_strided_slice %10 {offsets = [8, 0], sizes = [8, 32], strides = [1, 1]} : vector<24x64xf32> to vector<8x32xf32>
    %93 = vector.extract_strided_slice %10 {offsets = [8, 32], sizes = [8, 32], strides = [1, 1]} : vector<24x64xf32> to vector<8x32xf32>
    %94 = vector.extract_strided_slice %12 {offsets = [8, 0], sizes = [8, 32], strides = [1, 1]} : vector<24x32xf32> to vector<8x32xf32>
    %95 = vector.extract_strided_slice %10 {offsets = [16, 0], sizes = [8, 32], strides = [1, 1]} : vector<24x64xf32> to vector<8x32xf32>
    %96 = vector.extract_strided_slice %10 {offsets = [16, 32], sizes = [8, 32], strides = [1, 1]} : vector<24x64xf32> to vector<8x32xf32>
    %97 = vector.extract_strided_slice %12 {offsets = [16, 0], sizes = [8, 32], strides = [1, 1]} : vector<24x32xf32> to vector<8x32xf32>
    %98 = vector.extract_strided_slice %83 {offsets = [8, 0], sizes = [8, 32], strides = [1, 1]} : vector<16x64xf32> to vector<8x32xf32>
    %99 = vector.extract_strided_slice %83 {offsets = [8, 32], sizes = [8, 32], strides = [1, 1]} : vector<16x64xf32> to vector<8x32xf32>
    %cst_38 = arith.constant 0.176776692 : f32
    %100 = vector.broadcast %cst_38 : f32 to vector<8x32xf32>
    %101 = arith.mulf %91, %100 : vector<8x32xf32>
    %102 = arith.mulf %101, %87 : vector<8x32xf32>
    %cst_39 = arith.constant dense<0.000000e+00> : vector<8xf32>
    %103 = vector.multi_reduction <add>, %102, %cst_39 [1] : vector<8x32xf32> to vector<8xf32>
    %104 = vector.shape_cast %103 : vector<8xf32> to vector<8x1xf32>
    %105 = arith.mulf %101, %89 : vector<8x32xf32>
    %cst_40 = arith.constant dense<0.000000e+00> : vector<8xf32>
    %106 = vector.multi_reduction <add>, %105, %cst_40 [1] : vector<8x32xf32> to vector<8xf32>
    %107 = vector.shape_cast %106 : vector<8xf32> to vector<8x1xf32>
    %108 = tpu.concatenate %104, %107 in 1 : vector<8x1xf32>, vector<8x1xf32> -> vector<8x2xf32>
    %cst_41 = arith.constant dense<0xFF800000> : vector<8xf32>
    %109 = vector.multi_reduction <maximumf>, %108, %cst_41 [1] : vector<8x2xf32> to vector<8xf32>
    %110 = vector.shape_cast %109 : vector<8xf32> to vector<8x1xf32>
    %111 = vector.broadcast %110 : vector<8x1xf32> to vector<8x2xf32>
    %112 = arith.subf %108, %111 : vector<8x2xf32>
    %113 = math.exp %112 : vector<8x2xf32>
    %cst_42 = arith.constant dense<0.000000e+00> : vector<8xf32>
    %114 = vector.multi_reduction <add>, %113, %cst_42 [1] : vector<8x2xf32> to vector<8xf32>
    %115 = vector.shape_cast %114 : vector<8xf32> to vector<8x1xf32>
    %116 = tpu.reciprocal %115 {approx = true} : vector<8x1xf32> -> vector<8x1xf32>
    %117 = vector.broadcast %116 : vector<8x1xf32> to vector<8x2xf32>
    %118 = arith.mulf %113, %117 : vector<8x2xf32>
    %119 = vector.extract_strided_slice %118 {offsets = [0, 0], sizes = [8, 1], strides = [1, 1]} : vector<8x2xf32> to vector<8x1xf32>
    %120 = vector.broadcast %119 : vector<8x1xf32> to vector<8x32xf32>
    %121 = arith.mulf %120, %88 : vector<8x32xf32>
    %122 = vector.extract_strided_slice %118 {offsets = [0, 1], sizes = [8, 1], strides = [1, 1]} : vector<8x2xf32> to vector<8x1xf32>
    %123 = vector.broadcast %122 : vector<8x1xf32> to vector<8x32xf32>
    %124 = arith.mulf %123, %90 : vector<8x32xf32>
    %125 = arith.addf %121, %124 : vector<8x32xf32>
    %cst_43 = arith.constant 0.176776692 : f32
    %126 = vector.broadcast %cst_43 : f32 to vector<8x32xf32>
    %127 = arith.mulf %94, %126 : vector<8x32xf32>
    %128 = arith.mulf %127, %87 : vector<8x32xf32>
    %cst_44 = arith.constant dense<0.000000e+00> : vector<8xf32>
    %129 = vector.multi_reduction <add>, %128, %cst_44 [1] : vector<8x32xf32> to vector<8xf32>
    %130 = vector.shape_cast %129 : vector<8xf32> to vector<8x1xf32>
    %131 = arith.mulf %127, %89 : vector<8x32xf32>
    %cst_45 = arith.constant dense<0.000000e+00> : vector<8xf32>
    %132 = vector.multi_reduction <add>, %131, %cst_45 [1] : vector<8x32xf32> to vector<8xf32>
    %133 = vector.shape_cast %132 : vector<8xf32> to vector<8x1xf32>
    %134 = arith.mulf %127, %92 : vector<8x32xf32>
    %cst_46 = arith.constant dense<0.000000e+00> : vector<8xf32>
    %135 = vector.multi_reduction <add>, %134, %cst_46 [1] : vector<8x32xf32> to vector<8xf32>
    %136 = vector.shape_cast %135 : vector<8xf32> to vector<8x1xf32>
    %137 = tpu.concatenate %130, %133, %136 in 1 : vector<8x1xf32>, vector<8x1xf32>, vector<8x1xf32> -> vector<8x3xf32>
    %cst_47 = arith.constant dense<0xFF800000> : vector<8xf32>
    %138 = vector.multi_reduction <maximumf>, %137, %cst_47 [1] : vector<8x3xf32> to vector<8xf32>
    %139 = vector.shape_cast %138 : vector<8xf32> to vector<8x1xf32>
    %140 = vector.broadcast %139 : vector<8x1xf32> to vector<8x3xf32>
    %141 = arith.subf %137, %140 : vector<8x3xf32>
    %142 = math.exp %141 : vector<8x3xf32>
    %cst_48 = arith.constant dense<0.000000e+00> : vector<8xf32>
    %143 = vector.multi_reduction <add>, %142, %cst_48 [1] : vector<8x3xf32> to vector<8xf32>
    %144 = vector.shape_cast %143 : vector<8xf32> to vector<8x1xf32>
    %145 = tpu.reciprocal %144 {approx = true} : vector<8x1xf32> -> vector<8x1xf32>
    %146 = vector.broadcast %145 : vector<8x1xf32> to vector<8x3xf32>
    %147 = arith.mulf %142, %146 : vector<8x3xf32>
    %148 = vector.extract_strided_slice %147 {offsets = [0, 0], sizes = [8, 1], strides = [1, 1]} : vector<8x3xf32> to vector<8x1xf32>
    %149 = vector.broadcast %148 : vector<8x1xf32> to vector<8x32xf32>
    %150 = arith.mulf %149, %88 : vector<8x32xf32>
    %151 = vector.extract_strided_slice %147 {offsets = [0, 1], sizes = [8, 1], strides = [1, 1]} : vector<8x3xf32> to vector<8x1xf32>
    %152 = vector.broadcast %151 : vector<8x1xf32> to vector<8x32xf32>
    %153 = arith.mulf %152, %90 : vector<8x32xf32>
    %154 = arith.addf %150, %153 : vector<8x32xf32>
    %155 = vector.extract_strided_slice %147 {offsets = [0, 2], sizes = [8, 1], strides = [1, 1]} : vector<8x3xf32> to vector<8x1xf32>
    %156 = vector.broadcast %155 : vector<8x1xf32> to vector<8x32xf32>
    %157 = arith.mulf %156, %93 : vector<8x32xf32>
    %158 = arith.addf %154, %157 : vector<8x32xf32>
    %cst_49 = arith.constant 0.176776692 : f32
    %159 = vector.broadcast %cst_49 : f32 to vector<8x32xf32>
    %160 = arith.mulf %97, %159 : vector<8x32xf32>
    %161 = arith.mulf %160, %87 : vector<8x32xf32>
    %cst_50 = arith.constant dense<0.000000e+00> : vector<8xf32>
    %162 = vector.multi_reduction <add>, %161, %cst_50 [1] : vector<8x32xf32> to vector<8xf32>
    %163 = vector.shape_cast %162 : vector<8xf32> to vector<8x1xf32>
    %164 = arith.mulf %160, %89 : vector<8x32xf32>
    %cst_51 = arith.constant dense<0.000000e+00> : vector<8xf32>
    %165 = vector.multi_reduction <add>, %164, %cst_51 [1] : vector<8x32xf32> to vector<8xf32>
    %166 = vector.shape_cast %165 : vector<8xf32> to vector<8x1xf32>
    %167 = arith.mulf %160, %92 : vector<8x32xf32>
    %cst_52 = arith.constant dense<0.000000e+00> : vector<8xf32>
    %168 = vector.multi_reduction <add>, %167, %cst_52 [1] : vector<8x32xf32> to vector<8xf32>
    %169 = vector.shape_cast %168 : vector<8xf32> to vector<8x1xf32>
    %170 = arith.mulf %160, %95 : vector<8x32xf32>
    %cst_53 = arith.constant dense<0.000000e+00> : vector<8xf32>
    %171 = vector.multi_reduction <add>, %170, %cst_53 [1] : vector<8x32xf32> to vector<8xf32>
    %172 = vector.shape_cast %171 : vector<8xf32> to vector<8x1xf32>
    %173 = tpu.concatenate %163, %166, %169, %172 in 1 : vector<8x1xf32>, vector<8x1xf32>, vector<8x1xf32>, vector<8x1xf32> -> vector<8x4xf32>
    %cst_54 = arith.constant dense<0xFF800000> : vector<8xf32>
    %174 = vector.multi_reduction <maximumf>, %173, %cst_54 [1] : vector<8x4xf32> to vector<8xf32>
    %175 = vector.shape_cast %174 : vector<8xf32> to vector<8x1xf32>
    %176 = vector.broadcast %175 : vector<8x1xf32> to vector<8x4xf32>
    %177 = arith.subf %173, %176 : vector<8x4xf32>
    %178 = math.exp %177 : vector<8x4xf32>
    %cst_55 = arith.constant dense<0.000000e+00> : vector<8xf32>
    %179 = vector.multi_reduction <add>, %178, %cst_55 [1] : vector<8x4xf32> to vector<8xf32>
    %180 = vector.shape_cast %179 : vector<8xf32> to vector<8x1xf32>
    %181 = tpu.reciprocal %180 {approx = true} : vector<8x1xf32> -> vector<8x1xf32>
    %182 = vector.broadcast %181 : vector<8x1xf32> to vector<8x4xf32>
    %183 = arith.mulf %178, %182 : vector<8x4xf32>
    %184 = vector.extract_strided_slice %183 {offsets = [0, 0], sizes = [8, 1], strides = [1, 1]} : vector<8x4xf32> to vector<8x1xf32>
    %185 = vector.broadcast %184 : vector<8x1xf32> to vector<8x32xf32>
    %186 = arith.mulf %185, %88 : vector<8x32xf32>
    %187 = vector.extract_strided_slice %183 {offsets = [0, 1], sizes = [8, 1], strides = [1, 1]} : vector<8x4xf32> to vector<8x1xf32>
    %188 = vector.broadcast %187 : vector<8x1xf32> to vector<8x32xf32>
    %189 = arith.mulf %188, %90 : vector<8x32xf32>
    %190 = arith.addf %186, %189 : vector<8x32xf32>
    %191 = vector.extract_strided_slice %183 {offsets = [0, 2], sizes = [8, 1], strides = [1, 1]} : vector<8x4xf32> to vector<8x1xf32>
    %192 = vector.broadcast %191 : vector<8x1xf32> to vector<8x32xf32>
    %193 = arith.mulf %192, %93 : vector<8x32xf32>
    %194 = arith.addf %190, %193 : vector<8x32xf32>
    %195 = vector.extract_strided_slice %183 {offsets = [0, 3], sizes = [8, 1], strides = [1, 1]} : vector<8x4xf32> to vector<8x1xf32>
    %196 = vector.broadcast %195 : vector<8x1xf32> to vector<8x32xf32>
    %197 = arith.mulf %196, %96 : vector<8x32xf32>
    %198 = arith.addf %194, %197 : vector<8x32xf32>
    %cst_56 = arith.constant 0.176776692 : f32
    %199 = vector.broadcast %cst_56 : f32 to vector<8x32xf32>
    %200 = arith.mulf %86, %199 : vector<8x32xf32>
    %201 = arith.mulf %200, %87 : vector<8x32xf32>
    %cst_57 = arith.constant dense<0.000000e+00> : vector<8xf32>
    %202 = vector.multi_reduction <add>, %201, %cst_57 [1] : vector<8x32xf32> to vector<8xf32>
    %203 = vector.shape_cast %202 : vector<8xf32> to vector<8x1xf32>
    %204 = arith.mulf %200, %89 : vector<8x32xf32>
    %cst_58 = arith.constant dense<0.000000e+00> : vector<8xf32>
    %205 = vector.multi_reduction <add>, %204, %cst_58 [1] : vector<8x32xf32> to vector<8xf32>
    %206 = vector.shape_cast %205 : vector<8xf32> to vector<8x1xf32>
    %207 = arith.mulf %200, %92 : vector<8x32xf32>
    %cst_59 = arith.constant dense<0.000000e+00> : vector<8xf32>
    %208 = vector.multi_reduction <add>, %207, %cst_59 [1] : vector<8x32xf32> to vector<8xf32>
    %209 = vector.shape_cast %208 : vector<8xf32> to vector<8x1xf32>
    %210 = arith.mulf %200, %95 : vector<8x32xf32>
    %cst_60 = arith.constant dense<0.000000e+00> : vector<8xf32>
    %211 = vector.multi_reduction <add>, %210, %cst_60 [1] : vector<8x32xf32> to vector<8xf32>
    %212 = vector.shape_cast %211 : vector<8xf32> to vector<8x1xf32>
    %213 = arith.mulf %200, %98 : vector<8x32xf32>
    %cst_61 = arith.constant dense<0.000000e+00> : vector<8xf32>
    %214 = vector.multi_reduction <add>, %213, %cst_61 [1] : vector<8x32xf32> to vector<8xf32>
    %215 = vector.shape_cast %214 : vector<8xf32> to vector<8x1xf32>
    %216 = tpu.concatenate %203, %206, %209, %212, %215 in 1 : vector<8x1xf32>, vector<8x1xf32>, vector<8x1xf32>, vector<8x1xf32>, vector<8x1xf32> -> vector<8x5xf32>
    %cst_62 = arith.constant dense<0xFF800000> : vector<8xf32>
    %217 = vector.multi_reduction <maximumf>, %216, %cst_62 [1] : vector<8x5xf32> to vector<8xf32>
    %218 = vector.shape_cast %217 : vector<8xf32> to vector<8x1xf32>
    %219 = vector.broadcast %218 : vector<8x1xf32> to vector<8x5xf32>
    %220 = arith.subf %216, %219 : vector<8x5xf32>
    %221 = math.exp %220 : vector<8x5xf32>
    %cst_63 = arith.constant dense<0.000000e+00> : vector<8xf32>
    %222 = vector.multi_reduction <add>, %221, %cst_63 [1] : vector<8x5xf32> to vector<8xf32>
    %223 = vector.shape_cast %222 : vector<8xf32> to vector<8x1xf32>
    %224 = tpu.reciprocal %223 {approx = true} : vector<8x1xf32> -> vector<8x1xf32>
    %225 = vector.broadcast %224 : vector<8x1xf32> to vector<8x5xf32>
    %226 = arith.mulf %221, %225 : vector<8x5xf32>
    %227 = vector.extract_strided_slice %226 {offsets = [0, 0], sizes = [8, 1], strides = [1, 1]} : vector<8x5xf32> to vector<8x1xf32>
    %228 = vector.broadcast %227 : vector<8x1xf32> to vector<8x32xf32>
    %229 = arith.mulf %228, %88 : vector<8x32xf32>
    %230 = vector.extract_strided_slice %226 {offsets = [0, 1], sizes = [8, 1], strides = [1, 1]} : vector<8x5xf32> to vector<8x1xf32>
    %231 = vector.broadcast %230 : vector<8x1xf32> to vector<8x32xf32>
    %232 = arith.mulf %231, %90 : vector<8x32xf32>
    %233 = arith.addf %229, %232 : vector<8x32xf32>
    %234 = vector.extract_strided_slice %226 {offsets = [0, 2], sizes = [8, 1], strides = [1, 1]} : vector<8x5xf32> to vector<8x1xf32>
    %235 = vector.broadcast %234 : vector<8x1xf32> to vector<8x32xf32>
    %236 = arith.mulf %235, %93 : vector<8x32xf32>
    %237 = arith.addf %233, %236 : vector<8x32xf32>
    %238 = vector.extract_strided_slice %226 {offsets = [0, 3], sizes = [8, 1], strides = [1, 1]} : vector<8x5xf32> to vector<8x1xf32>
    %239 = vector.broadcast %238 : vector<8x1xf32> to vector<8x32xf32>
    %240 = arith.mulf %239, %96 : vector<8x32xf32>
    %241 = arith.addf %237, %240 : vector<8x32xf32>
    %242 = vector.extract_strided_slice %226 {offsets = [0, 4], sizes = [8, 1], strides = [1, 1]} : vector<8x5xf32> to vector<8x1xf32>
    %243 = vector.broadcast %242 : vector<8x1xf32> to vector<8x32xf32>
    %244 = arith.mulf %243, %99 : vector<8x32xf32>
    %245 = arith.addf %241, %244 : vector<8x32xf32>
    %246 = tpu.concatenate %125, %158, %198, %245 in 0 : vector<8x32xf32>, vector<8x32xf32>, vector<8x32xf32>, vector<8x32xf32> -> vector<32x32xf32>
    %247 = arith.truncf %246 : vector<32x32xf32> to vector<32x32xbf16>
    %c0_64 = arith.constant 0 : index
    %c0_65 = arith.constant 0 : index
    %248 = vector.load %arg8[%c0_64, %c0_65] : memref<32x32xbf16, #tpu.memory_space<vmem>>, vector<32x32xbf16>
    %cst_66 = arith.constant dense<0.000000e+00> : vector<32x32xf32>
    %249 = tpu.matmul %247, %248, %cst_66 {dimension_numbers = #tpu.dot_dimension_numbers<[1], [0], [0], [1], [0, 0, 1, 1], [], []>} : vector<32x32xbf16>, vector<32x32xbf16>, vector<32x32xf32> -> vector<32x32xf32>
    %250 = vector.extract_strided_slice %249 {offsets = [0, 0], sizes = [8, 32], strides = [1, 1]} : vector<32x32xf32> to vector<8x32xf32>
    %251 = vector.extract_strided_slice %249 {offsets = [8, 0], sizes = [8, 32], strides = [1, 1]} : vector<32x32xf32> to vector<8x32xf32>
    %252 = vector.extract_strided_slice %249 {offsets = [16, 0], sizes = [8, 32], strides = [1, 1]} : vector<32x32xf32> to vector<8x32xf32>
    %253 = vector.extract_strided_slice %249 {offsets = [24, 0], sizes = [8, 32], strides = [1, 1]} : vector<32x32xf32> to vector<8x32xf32>
    %254 = tpu.concatenate %250, %251, %252, %253 in 1 : vector<8x32xf32>, vector<8x32xf32>, vector<8x32xf32>, vector<8x32xf32> -> vector<8x128xf32>
    %255 = vector.broadcast %3 : vector<8x1xf32> to vector<8x128xf32>
    %256 = arith.mulf %254, %255 : vector<8x128xf32>
    %c0_67 = arith.constant 0 : index
    %c0_68 = arith.constant 0 : index
    %c0_69 = arith.constant 0 : index
    %257 = vector.load %arg9[%c0_67, %c0_68, %c0_69] : memref<1x8x128xf32, #tpu.memory_space<vmem>>, vector<1x8x128xf32>
    %258 = vector.shape_cast %257 : vector<1x8x128xf32> to vector<8x128xf32>
    %259 = vector.shape_cast %256 : vector<8x128xf32> to vector<1x8x128xf32>
    tpu.vector_store %arg9[%c0_67, %c0_68, %c0_69], %259 {strides = array<i32>} : memref<1x8x128xf32, #tpu.memory_space<vmem>>, vector<1x8x128xf32>,
    return
  }
  func.func @transform_0(%arg0: i32) -> (i32, i32, i32) {
    %c0_i32 = arith.constant 0 : i32
    %c0_i32_0 = arith.constant 0 : i32
    %c0_i32_1 = arith.constant 0 : i32
    return %arg0, %c0_i32, %c0_i32_0 : i32, i32, i32
  }
  func.func @transform_1(%arg0: i32) -> (i32, i32, i32) {
    %c0_i32 = arith.constant 0 : i32
    %c0_i32_0 = arith.constant 0 : i32
    %c0_i32_1 = arith.constant 0 : i32
    return %arg0, %c0_i32, %c0_i32_0 : i32, i32, i32
  }
  func.func @transform_2(%arg0: i32) -> (i32, i32, i32) {
    %c0_i32 = arith.constant 0 : i32
    %c0_i32_0 = arith.constant 0 : i32
    %c0_i32_1 = arith.constant 0 : i32
    return %arg0, %c0_i32, %c0_i32_0 : i32, i32, i32
  }
  func.func @transform_3(%arg0: i32) -> (i32, i32) {
    %c0_i32 = arith.constant 0 : i32
    %c0_i32_0 = arith.constant 0 : i32
    %c0_i32_1 = arith.constant 0 : i32
    return %c0_i32, %c0_i32_0 : i32, i32
  }
  func.func @transform_4(%arg0: i32) -> (i32, i32) {
    %c0_i32 = arith.constant 0 : i32
    %c0_i32_0 = arith.constant 0 : i32
    %c0_i32_1 = arith.constant 0 : i32
    return %c0_i32, %c0_i32_0 : i32, i32
  }
  func.func @transform_5(%arg0: i32) -> (i32, i32) {
    %c0_i32 = arith.constant 0 : i32
    %c0_i32_0 = arith.constant 0 : i32
    %c0_i32_1 = arith.constant 0 : i32
    return %c0_i32, %c0_i32_0 : i32, i32
  }
  func.func @transform_6(%arg0: i32) -> (i32, i32) {
    %c0_i32 = arith.constant 0 : i32
    %c0_i32_0 = arith.constant 0 : i32
    %c0_i32_1 = arith.constant 0 : i32
    return %c0_i32, %c0_i32_0 : i32, i32
  }
  func.func @transform_7(%arg0: i32) -> (i32, i32) {
    %c0_i32 = arith.constant 0 : i32
    %c0_i32_0 = arith.constant 0 : i32
    %c0_i32_1 = arith.constant 0 : i32
    return %c0_i32, %c0_i32_0 : i32, i32
  }
  func.func @transform_8(%arg0: i32) -> (i32, i32, i32) {
    %c0_i32 = arith.constant 0 : i32
    %c0_i32_0 = arith.constant 0 : i32
    %c0_i32_1 = arith.constant 0 : i32
    return %arg0, %c0_i32, %c0_i32_0 : i32, i32, i32
  }
}

</mosaic_0001>

<llo_original>
// kernel: structured_attention_forward.1
$region0: #{structured_attention_forward.1}
  #allocation0 [shape = 'u32[]', space=smem, size = 0x4, offset = 0x4, fixed_abs, tag = 'smem constant byte address 0x4 - core index']
  #allocation1 [shape = 'u32[144,128]{1,0:T(1,128)}', space=vmem, size = 0x12000, scoped, tag = 'internal scratch']
  %s0 = inlined_call_operand.vmem [shape: f32[2,8,128], index: 0, kind: input, shape index: {}]
  %s1 = inlined_call_operand.vmem [shape: f32[2,8,1], index: 1, kind: input, shape index: {}]
  %s2 = inlined_call_operand.vmem [shape: f32[2,1,8], index: 2, kind: input, shape index: {}]
  %s3 = inlined_call_operand.vmem [shape: bf16[32,96], index: 3, kind: input, shape index: {}]
  %s4 = inlined_call_operand.vmem [shape: bf16[32,32], index: 4, kind: input, shape index: {}]
  %s5 = inlined_call_operand.vmem [shape: bf16[32,32], index: 5, kind: input, shape index: {}]
  %s6 = inlined_call_operand.vmem [shape: bf16[32,64], index: 6, kind: input, shape index: {}]
  %s7 = inlined_call_operand.vmem [shape: bf16[32,32], index: 7, kind: input, shape index: {}]
  %s8 = inlined_call_operand.vmem [shape: f32[2,8,128], index: 8, kind: output, shape index: {}]
  %s9 = sld [smem:[#allocation0]]
  $region65: #{structured_attention_forward.1} parent=0
    _
  %s11 = ssub.s32 1, %s9
  %s12 = scalar_select 0, %s11, %s9
  loop: start=0, step=1, limit=4
  $region2: #{structured_attention_forward.1} parent=0 // loop_pre_header
    _
  $region3: #{structured_attention_forward.1} parent=0 // loop_header
    %s14 = sphi 0, %s18
    %p15 = scmp.ge.s32.totalorder %s14, 4
    %s24 = sphi 0, %s26
    %s27 = sphi 0, %s24
    %s28 = sphi 0, %s27
    %s44 = sphi 0, %s28
    %s50 = sphi 0, %s52
    %s53 = sphi 0, %s50
    %s54 = sphi 0, %s53
    %s70 = sphi 0, %s54
    %s76 = sphi 0, %s78
    %s79 = sphi 0, %s76
    %s80 = sphi 0, %s79
    %s96 = sphi 0, %s80
    %s100 = sphi 0, %s100
    %s102 = sphi 0, %s100
    %s103 = sphi 0, %s102
    %s117 = sphi 0, %s103
    %s121 = sphi 0, %s121
    %s123 = sphi 0, %s121
    %s124 = sphi 0, %s123
    %s138 = sphi 0, %s124
    %s142 = sphi 0, %s142
    %s144 = sphi 0, %s142
    %s145 = sphi 0, %s144
    %s159 = sphi 0, %s145
    %s163 = sphi 0, %s163
    %s165 = sphi 0, %s163
    %s166 = sphi 0, %s165
    %s180 = sphi 0, %s166
    %s184 = sphi 0, %s184
    %s186 = sphi 0, %s184
    %s187 = sphi 0, %s186
    %s201 = sphi 0, %s187
    %s207 = sphi 0, %s209
    %s210 = sphi 0, %s207
    %s211 = sphi 0, %s210
    %s227 = sphi 0, %s211
  $region4: #{structured_attention_forward.1} parent=0 // loop_header_branch
    %17 = sbr.rel (%p15) target = $region8
  $region5: #{structured_attention_forward.1} parent=0 // loop_body
    %s19 = ssub.s32 %s14, 1
    %s20 = ssub.s32 %s14, 2
    %s21 = sadd.s32 %s14, 1
    %s22 = ssub.s32 %s14, %s21
    %p23 = scmp.eq.s32.totalorder %s22, 0
    %s25 = sadd.s32 %s24, 1
    %s26 = scalar_select %p23, %s24, %s25
    %p29 = pneg %p23
    %p30 = scmp.eq.s32.totalorder %s14, 1
    %p31 = por %p29, %p30
    %p32 = scmp.ne.s32.totalorder %s24, %s27
    %p33 = scmp.eq.s32.totalorder %s14, 0
    %p34 = por %p32, %p33
    %p35 = scmp.ne.s32.totalorder %s24, %s27
    %p36 = scmp.eq.s32.totalorder %s19, 1
    %p37 = por %p35, %p36
    %p38 = scmp.ne.s32.totalorder %s27, %s28
    %p39 = scmp.eq.s32.totalorder %s19, 0
    %p40 = por %p38, %p39
    %p41 = scmp.ne.s32.totalorder %s27, %s28
    %p42 = scmp.eq.s32.totalorder %s20, 1
    %p43 = por %p41, %p42
    %p45 = scmp.ne.s32.totalorder %s28, %s44
    %p46 = scmp.eq.s32.totalorder %s20, 0
    %p47 = por %p45, %p46
    %s48 = ssub.s32 %s14, %s21
    %p49 = scmp.eq.s32.totalorder %s48, 0
    %s51 = sadd.s32 %s50, 1
    %s52 = scalar_select %p49, %s50, %s51
    %p55 = pneg %p49
    %p56 = scmp.eq.s32.totalorder %s14, 1
    %p57 = por %p55, %p56
    %p58 = scmp.ne.s32.totalorder %s50, %s53
    %p59 = scmp.eq.s32.totalorder %s14, 0
    %p60 = por %p58, %p59
    %p61 = scmp.ne.s32.totalorder %s50, %s53
    %p62 = scmp.eq.s32.totalorder %s19, 1
    %p63 = por %p61, %p62
    %p64 = scmp.ne.s32.totalorder %s53, %s54
    %p65 = scmp.eq.s32.totalorder %s19, 0
    %p66 = por %p64, %p65
    %p67 = scmp.ne.s32.totalorder %s53, %s54
    %p68 = scmp.eq.s32.totalorder %s20, 1
    %p69 = por %p67, %p68
    %p71 = scmp.ne.s32.totalorder %s54, %s70
    %p72 = scmp.eq.s32.totalorder %s20, 0
    %p73 = por %p71, %p72
    %s74 = ssub.s32 %s14, %s21
    %p75 = scmp.eq.s32.totalorder %s74, 0
    %s77 = sadd.s32 %s76, 1
    %s78 = scalar_select %p75, %s76, %s77
    %p81 = pneg %p75
    %p82 = scmp.eq.s32.totalorder %s14, 1
    %p83 = por %p81, %p82
    %p84 = scmp.ne.s32.totalorder %s76, %s79
    %p85 = scmp.eq.s32.totalorder %s14, 0
    %p86 = por %p84, %p85
    %p87 = scmp.ne.s32.totalorder %s76, %s79
    %p88 = scmp.eq.s32.totalorder %s19, 1
    %p89 = por %p87, %p88
    %p90 = scmp.ne.s32.totalorder %s79, %s80
    %p91 = scmp.eq.s32.totalorder %s19, 0
    %p92 = por %p90, %p91
    %p93 = scmp.ne.s32.totalorder %s79, %s80
    %p94 = scmp.eq.s32.totalorder %s20, 1
    %p95 = por %p93, %p94
    %p97 = scmp.ne.s32.totalorder %s80, %s96
    %p98 = scmp.eq.s32.totalorder %s20, 0
    %p99 = por %p97, %p98
    %s101 = sadd.s32 %s100, 1
    %p104 = scmp.eq.s32.totalorder %s14, 1
    %p105 = scmp.ne.s32.totalorder %s100, %s102
    %p106 = scmp.eq.s32.totalorder %s14, 0
    %p107 = por %p105, %p106
    %p108 = scmp.ne.s32.totalorder %s100, %s102
    %p109 = scmp.eq.s32.totalorder %s19, 1
    %p110 = por %p108, %p109
    %p111 = scmp.ne.s32.totalorder %s102, %s103
    %p112 = scmp.eq.s32.totalorder %s19, 0
    %p113 = por %p111, %p112
    %p114 = scmp.ne.s32.totalorder %s102, %s103
    %p115 = scmp.eq.s32.totalorder %s20, 1
    %p116 = por %p114, %p115
    %p118 = scmp.ne.s32.totalorder %s103, %s117
    %p119 = scmp.eq.s32.totalorder %s20, 0
    %p120 = por %p118, %p119
    %s122 = sadd.s32 %s121, 1
    %p125 = scmp.eq.s32.totalorder %s14, 1
    %p126 = scmp.ne.s32.totalorder %s121, %s123
    %p127 = scmp.eq.s32.totalorder %s14, 0
    %p128 = por %p126, %p127
    %p129 = scmp.ne.s32.totalorder %s121, %s123
    %p130 = scmp.eq.s32.totalorder %s19, 1
    %p131 = por %p129, %p130
    %p132 = scmp.ne.s32.totalorder %s123, %s124
    %p133 = scmp.eq.s32.totalorder %s19, 0
    %p134 = por %p132, %p133
    %p135 = scmp.ne.s32.totalorder %s123, %s124
    %p136 = scmp.eq.s32.totalorder %s20, 1
    %p137 = por %p135, %p136
    %p139 = scmp.ne.s32.totalorder %s124, %s138
    %p140 = scmp.eq.s32.totalorder %s20, 0
    %p141 = por %p139, %p140
    %s143 = sadd.s32 %s142, 1
    %p146 = scmp.eq.s32.totalorder %s14, 1
    %p147 = scmp.ne.s32.totalorder %s142, %s144
    %p148 = scmp.eq.s32.totalorder %s14, 0
    %p149 = por %p147, %p148
    %p150 = scmp.ne.s32.totalorder %s142, %s144
    %p151 = scmp.eq.s32.totalorder %s19, 1
    %p152 = por %p150, %p151
    %p153 = scmp.ne.s32.totalorder %s144, %s145
    %p154 = scmp.eq.s32.totalorder %s19, 0
    %p155 = por %p153, %p154
    %p156 = scmp.ne.s32.totalorder %s144, %s145
    %p157 = scmp.eq.s32.totalorder %s20, 1
    %p158 = por %p156, %p157
    %p160 = scmp.ne.s32.totalorder %s145, %s159
    %p161 = scmp.eq.s32.totalorder %s20, 0
    %p162 = por %p160, %p161
    %s164 = sadd.s32 %s163, 1
    %p167 = scmp.eq.s32.totalorder %s14, 1
    %p168 = scmp.ne.s32.totalorder %s163, %s165
    %p169 = scmp.eq.s32.totalorder %s14, 0
    %p170 = por %p168, %p169
    %p171 = scmp.ne.s32.totalorder %s163, %s165
    %p172 = scmp.eq.s32.totalorder %s19, 1
    %p173 = por %p171, %p172
    %p174 = scmp.ne.s32.totalorder %s165, %s166
    %p175 = scmp.eq.s32.totalorder %s19, 0
    %p176 = por %p174, %p175
    %p177 = scmp.ne.s32.totalorder %s165, %s166
    %p178 = scmp.eq.s32.totalorder %s20, 1
    %p179 = por %p177, %p178
    %p181 = scmp.ne.s32.totalorder %s166, %s180
    %p182 = scmp.eq.s32.totalorder %s20, 0
    %p183 = por %p181, %p182
    %s185 = sadd.s32 %s184, 1
    %p188 = scmp.eq.s32.totalorder %s14, 1
    %p189 = scmp.ne.s32.totalorder %s184, %s186
    %p190 = scmp.eq.s32.totalorder %s14, 0
    %p191 = por %p189, %p190
    %p192 = scmp.ne.s32.totalorder %s184, %s186
    %p193 = scmp.eq.s32.totalorder %s19, 1
    %p194 = por %p192, %p193
    %p195 = scmp.ne.s32.totalorder %s186, %s187
    %p196 = scmp.eq.s32.totalorder %s19, 0
    %p197 = por %p195, %p196
    %p198 = scmp.ne.s32.totalorder %s186, %s187
    %p199 = scmp.eq.s32.totalorder %s20, 1
    %p200 = por %p198, %p199
    %p202 = scmp.ne.s32.totalorder %s187, %s201
    %p203 = scmp.eq.s32.totalorder %s20, 0
    %p204 = por %p202, %p203
    %s205 = ssub.s32 %s14, %s21
    %p206 = scmp.eq.s32.totalorder %s205, 0
    %s208 = sadd.s32 %s207, 1
    %s209 = scalar_select %p206, %s207, %s208
    %p212 = pneg %p206
    %p213 = scmp.eq.s32.totalorder %s14, 1
    %p214 = por %p212, %p213
    %p215 = scmp.ne.s32.totalorder %s207, %s210
    %p216 = scmp.eq.s32.totalorder %s14, 0
    %p217 = por %p215, %p216
    %p218 = scmp.ne.s32.totalorder %s207, %s210
    %p219 = scmp.eq.s32.totalorder %s19, 1
    %p220 = por %p218, %p219
    %p221 = scmp.ne.s32.totalorder %s210, %s211
    %p222 = scmp.eq.s32.totalorder %s19, 0
    %p223 = por %p221, %p222
    %p224 = scmp.ne.s32.totalorder %s210, %s211
    %p225 = scmp.eq.s32.totalorder %s20, 1
    %p226 = por %p224, %p225
    %p228 = scmp.ne.s32.totalorder %s211, %s227
    %p229 = scmp.eq.s32.totalorder %s20, 0
    %p230 = por %p228, %p229
    %p231 = scmp.le.s32.totalorder 1, %s14
    %p232 = scmp.lt.s32.totalorder %s14, 3
    %p233 = pnand %p231, %p232
    %p234 = pneg %p233
    // Predicated region
    $region9: #{structured_attention_forward.1} parent=5 // pred_check
      _
    $region10: #{structured_attention_forward.1} parent=5 // pred_check_branch
      %236 = sbr.rel (%p233) target = $region12
    $region11: #{structured_attention_forward.1} parent=5 // pred_region
      %s237 = ssub.s32 %s14, 1
      // Predicated region
      $region13: #{structured_attention_forward.1} parent=11 // pred_check
        %p238 = pneg %p113
      $region14: #{structured_attention_forward.1} parent=11 // pred_check_branch
        %240 = sbr.rel (%p238) target = $region16
      $region15: #{structured_attention_forward.1} parent=11 // pred_region
        _
      $region16: #{structured_attention_forward.1} parent=11 // pred_fallthru
        _
      // Predicated region
      $region17: #{structured_attention_forward.1} parent=11 // pred_check
        %p241 = pneg %p134
      $region18: #{structured_attention_forward.1} parent=11 // pred_check_branch
        %243 = sbr.rel (%p241) target = $region20
      $region19: #{structured_attention_forward.1} parent=11 // pred_region
        _
      $region20: #{structured_attention_forward.1} parent=11 // pred_fallthru
        _
      // Predicated region
      $region21: #{structured_attention_forward.1} parent=11 // pred_check
        %p244 = pneg %p155
      $region22: #{structured_attention_forward.1} parent=11 // pred_check_branch
        %246 = sbr.rel (%p244) target = $region24
      $region23: #{structured_attention_forward.1} parent=11 // pred_region
        _
      $region24: #{structured_attention_forward.1} parent=11 // pred_fallthru
        _
      // Predicated region
      $region25: #{structured_attention_forward.1} parent=11 // pred_check
        %p247 = pneg %p176
      $region26: #{structured_attention_forward.1} parent=11 // pred_check_branch
        %249 = sbr.rel (%p247) target = $region28
      $region27: #{structured_attention_forward.1} parent=11 // pred_region
        _
      $region28: #{structured_attention_forward.1} parent=11 // pred_fallthru
        _
      // Predicated region
      $region29: #{structured_attention_forward.1} parent=11 // pred_check
        %p250 = pneg %p197
      $region30: #{structured_attention_forward.1} parent=11 // pred_check_branch
        %252 = sbr.rel (%p250) target = $region32
      $region31: #{structured_attention_forward.1} parent=11 // pred_region
        _
      $region32: #{structured_attention_forward.1} parent=11 // pred_fallthru
        _
    $region12: #{structured_attention_forward.1} parent=5 // pred_fallthru
      _
    %p253 = scmp.lt.s32.totalorder %s14, 2
    // Predicated region
    $region33: #{structured_attention_forward.1} parent=5 // pred_check
      %p254 = pneg %p253
    $region34: #{structured_attention_forward.1} parent=5 // pred_check_branch
      %256 = sbr.rel (%p254) target = $region36
    $region35: #{structured_attention_forward.1} parent=5 // pred_region
      // Predicated region
      $region37: #{structured_attention_forward.1} parent=35 // pred_check
        %p257 = pneg %p34
      $region38: #{structured_attention_forward.1} parent=35 // pred_check_branch
        %259 = sbr.rel (%p257) target = $region40
      $region39: #{structured_attention_forward.1} parent=35 // pred_region
        %p260 = scmp.lt.s32.totalorder %s14, 1
        %s261 = scalar_select %p260, %s14, 1
        %s262 = smul.addr %s261, 8
        %s263 = scalar_lea.vmem %s0, %s262
      $region40: #{structured_attention_forward.1} parent=35 // pred_fallthru
        _
      // Predicated region
      $region41: #{structured_attention_forward.1} parent=35 // pred_check
        %p264 = pneg %p60
      $region42: #{structured_attention_forward.1} parent=35 // pred_check_branch
        %266 = sbr.rel (%p264) target = $region44
      $region43: #{structured_attention_forward.1} parent=35 // pred_region
        %p267 = scmp.lt.s32.totalorder %s14, 1
        %s268 = scalar_select %p267, %s14, 1
        %s269 = smul.addr %s268, 8
        %s270 = scalar_lea.vmem %s1, %s269
      $region44: #{structured_attention_forward.1} parent=35 // pred_fallthru
        _
      // Predicated region
      $region45: #{structured_attention_forward.1} parent=35 // pred_check
        %p271 = pneg %p86
      $region46: #{structured_attention_forward.1} parent=35 // pred_check_branch
        %273 = sbr.rel (%p271) target = $region48
      $region47: #{structured_attention_forward.1} parent=35 // pred_region
        %p274 = scmp.lt.s32.totalorder %s14, 1
        %s275 = scalar_select %p274, %s14, 1
        %s276 = scalar_lea.vmem %s2, %s275
      $region48: #{structured_attention_forward.1} parent=35 // pred_fallthru
        _
    $region36: #{structured_attention_forward.1} parent=5 // pred_fallthru
      _
    %p277 = scmp.le.s32.totalorder 1, %s14
    %p278 = scmp.lt.s32.totalorder %s14, 3
    %p279 = pnand %p277, %p278
    %p280 = pneg %p279
    // Predicated region
    $region49: #{structured_attention_forward.1} parent=5 // pred_check
      _
    $region50: #{structured_attention_forward.1} parent=5 // pred_check_branch
      %282 = sbr.rel (%p279) target = $region52
    $region51: #{structured_attention_forward.1} parent=5 // pred_region
      %s283 = ssub.s32 %s14, 1
      %p284 = scmp.lt.s32.totalorder %s19, 1
      %s285 = scalar_select %p284, %s19, 1
      %s286 = smul.addr %s285, 8
      %s287 = scalar_lea.vmem %s0, %s286
      %p288 = pneg %p40
      %p289 = pneg %p37
      %p290 = scmp.lt.s32.totalorder %s19, 1
      %s291 = scalar_select %p290, %s19, 1
      %s292 = smul.addr %s291, 8
      %s293 = scalar_lea.vmem %s1, %s292
      %p294 = pneg %p66
      %p295 = pneg %p63
      %p296 = scmp.lt.s32.totalorder %s19, 1
      %s297 = scalar_select %p296, %s19, 1
      %s298 = scalar_lea.vmem %s2, %s297
      %p299 = pneg %p92
      %p300 = pneg %p89
      %p301 = pneg %p113
      %p302 = pneg %p110
      %p303 = pneg %p134
      %p304 = pneg %p131
      %p305 = pneg %p155
      %p306 = pneg %p152
      %p307 = pneg %p176
      %p308 = pneg %p173
      %p309 = pneg %p197
      %p310 = pneg %p194
      %p311 = pneg %p223
      %p312 = pneg %p220
      %p313 = scmp.lt.s32.totalorder %s19, 1
      %s314 = scalar_select %p313, %s19, 1
      %s315 = smul.addr %s314, 8
      %s316 = scalar_lea.vmem %s8, %s315
      %p317 = scmp.lt.s32.totalorder %s19, 1
      %s318 = scalar_select %p317, %s19, 1
      %s319 = smul.addr %s318, 8
      %s320 = scalar_lea.vmem %s0, %s319
      %p321 = scmp.lt.s32.totalorder %s19, 1
      %s322 = scalar_select %p321, %s19, 1
      %s323 = smul.addr %s322, 8
      %s324 = scalar_lea.vmem %s1, %s323
      %p325 = scmp.lt.s32.totalorder %s19, 1
      %s326 = scalar_select %p325, %s19, 1
      %s327 = scalar_lea.vmem %s2, %s326
      %p328 = scmp.lt.s32.totalorder %s19, 1
      %s329 = scalar_select %p328, %s19, 1
      %s330 = smul.addr %s329, 8
      %s331 = scalar_lea.vmem %s8, %s330
      %v333 = vld [vmem:[%s320] sm:$0xff]
      %v334 = vld [vmem:[%s324] sm:$0xff]
      %336 = vrot.lane.b32.xlu0 %v333, 96
      %v337 = vpop.permute.xlu0 %336
      %339 = vrot.lane.b32.xlu0 %v333, 64
      %v340 = vpop.permute.xlu0 %339
      %v342 = vpack.c.bf16 %v337, %v333
      %v343 = vpack.c.bf16 %v340, %v340
      %v344 = vld [vmem:[%s6] sm:$0xf]
      %v345 = vld [vmem:[%s6 + $0x4] sm:$0xf]
      %v346 = vld [vmem:[%s6 + $0x8] sm:$0xf]
      %v347 = vld [vmem:[%s6 + $0xc] sm:$0xf]
      %v352 = vunpack.c.l.b16 %v344
      %v353 = vunpack.c.l.b16 %v345
      %v354 = vunpack.c.l.b16 %v346
      %v355 = vunpack.c.l.b16 %v347
      %v356 = vpack.c.b16 %v353, %v352
      %v357 = vpack.c.b16 %v355, %v354
      %vm360 = vcmask 261120
      %v362 = vsel %vm360, %v342, 0
      %v365 = vsel %vm360, %v343, 0
      %367 = vmatprep.subr.bf16.mxu0 0
      %368 = vmatpush1.bf16.msra.mxu0 %v356
      %369 = vmatprep.subr.bf16.mxu0 0
      %370 = vmatpush1.bf16.msra.mxu0 %v357
      %371 = vmatprep.subr.bf16.mxu0 0
      %372 = vmatpush1.bf16.msra.mxu0 0
      %373 = vmatprep.subr.bf16.mxu0 0
      %374 = vmatpush1.bf16.msra.mxu0 0
      %375 = vmatprep.subr.bf16.mxu0 0
      %376 = vmatpush1.bf16.msra.mxu0 0
      %377 = vmatprep.subr.bf16.mxu0 0
      %378 = vmatpush1.bf16.msra.mxu0 0
      %379 = vmatprep.subr.bf16.mxu0 0
      %380 = vmatpush1.bf16.msra.mxu0 0
      %381 = vmatprep.subr.bf16.mxu0 0
      %382 = vmatpush1.bf16.msra.mxu0 0
      %383 = vmatprep.subr.bf16.mxu0 0
      %384 = vmatpush1.bf16.msra.mxu0 0
      %385 = vmatprep.subr.bf16.mxu0 0
      %386 = vmatpush1.bf16.msra.mxu0 0
      %387 = vmatprep.subr.bf16.mxu0 0
      %388 = vmatpush1.bf16.msra.mxu0 0
      %389 = vmatprep.subr.bf16.mxu0 0
      %390 = vmatpush1.bf16.msra.mxu0 0
      %391 = vmatprep.subr.bf16.mxu0 0
      %392 = vmatpush1.bf16.msra.mxu0 0
      %393 = vmatprep.subr.bf16.mxu0 0
      %394 = vmatpush1.bf16.msra.mxu0 0
      %395 = vmatprep.subr.bf16.mxu0 0
      %396 = vmatpush1.bf16.msra.mxu0 0
      %397 = vmatprep.subr.bf16.mxu0 0
      %398 = vmatpush1.bf16.msra.mxu0 0
      %399 = vmatprep.mubr.bf16.mxu0 0
      %400 = vmatmul.mubr.bf16.gmra.mrb[0].mxu0 %v362
      %v401 = vpop.f32.mrb[0].mxu0
      %v402 = vadd.f32 0.0, %v401
      %v403 = vpop.f32.mrb[0].mxu0
      %v404 = vpop.f32.mrb[0].mxu0
      %v405 = vadd.f32 0.0, %v404
      %v406 = vpop.f32.mrb[0].mxu0
      %407 = vmatprep.mubr.bf16.mxu0 0
      %408 = vmatmul.mubr.bf16.gmra.mrb[0].mxu0 %v365
      %v409 = vpop.f32.mrb[0].mxu0
      %v410 = vadd.f32 0.0, %v409
      %v411 = vpop.f32.mrb[0].mxu0
      %v412 = vpop.f32.mrb[0].mxu0
      %v413 = vpop.f32.mrb[0].mxu0
      %414 = vdwg.mxu0
      %v415 = vld [vmem:[%s5] sm:$0xf]
      %v416 = vld [vmem:[%s5 + $0x4] sm:$0xf]
      %v417 = vld [vmem:[%s5 + $0x8] sm:$0xf]
      %v418 = vld [vmem:[%s5 + $0xc] sm:$0xf]
      %v423 = vunpack.c.l.b16 %v415
      %v424 = vunpack.c.l.b16 %v416
      %v425 = vunpack.c.l.b16 %v417
      %v426 = vunpack.c.l.b16 %v418
      %v427 = vpack.c.b16 %v424, %v423
      %v428 = vpack.c.b16 %v426, %v425
      %431 = vmatprep.subr.bf16.mxu0 0
      %432 = vmatpush1.bf16.msra.mxu0 %v427
      %433 = vmatprep.subr.bf16.mxu0 0
      %434 = vmatpush1.bf16.msra.mxu0 %v428
      %435 = vmatprep.subr.bf16.mxu0 0
      %436 = vmatpush1.bf16.msra.mxu0 0
      %437 = vmatprep.subr.bf16.mxu0 0
      %438 = vmatpush1.bf16.msra.mxu0 0
      %439 = vmatprep.subr.bf16.mxu0 0
      %440 = vmatpush1.bf16.msra.mxu0 0
      %441 = vmatprep.subr.bf16.mxu0 0
      %442 = vmatpush1.bf16.msra.mxu0 0
      %443 = vmatprep.subr.bf16.mxu0 0
      %444 = vmatpush1.bf16.msra.mxu0 0
      %445 = vmatprep.subr.bf16.mxu0 0
      %446 = vmatpush1.bf16.msra.mxu0 0
      %447 = vmatprep.subr.bf16.mxu0 0
      %448 = vmatpush1.bf16.msra.mxu0 0
      %449 = vmatprep.subr.bf16.mxu0 0
      %450 = vmatpush1.bf16.msra.mxu0 0
      %451 = vmatprep.subr.bf16.mxu0 0
      %452 = vmatpush1.bf16.msra.mxu0 0
      %453 = vmatprep.subr.bf16.mxu0 0
      %454 = vmatpush1.bf16.msra.mxu0 0
      %455 = vmatprep.subr.bf16.mxu0 0
      %456 = vmatpush1.bf16.msra.mxu0 0
      %457 = vmatprep.subr.bf16.mxu0 0
      %458 = vmatpush1.bf16.msra.mxu0 0
      %459 = vmatprep.subr.bf16.mxu0 0
      %460 = vmatpush1.bf16.msra.mxu0 0
      %461 = vmatprep.subr.bf16.mxu0 0
      %462 = vmatpush1.bf16.msra.mxu0 0
      %463 = vmatprep.mubr.bf16.mxu0 0
      %464 = vmatmul.mubr.bf16.gmra.mrb[0].mxu0 %v362
      %v465 = vpop.f32.mrb[0].mxu0
      %v466 = vadd.f32 0.0, %v465
      %v467 = vpop.f32.mrb[0].mxu0
      %v468 = vpop.f32.mrb[0].mxu0
      %v469 = vadd.f32 0.0, %v468
      %v470 = vpop.f32.mrb[0].mxu0
      %471 = vmatprep.mubr.bf16.mxu0 0
      %472 = vmatmul.mubr.bf16.gmra.mrb[0].mxu0 %v365
      %v473 = vpop.f32.mrb[0].mxu0
      %v474 = vadd.f32 0.0, %v473
      %v475 = vpop.f32.mrb[0].mxu0
      %v476 = vpop.f32.mrb[0].mxu0
      %v477 = vpop.f32.mrb[0].mxu0
      %478 = vdwg.mxu0
      %480 = vset.pattern.permute.xlu0 0
      %481 = vperm.xlu0 %480, %v334
      %v482 = vpop.permute.xlu0 %481
      %v484 = vmul.f32 %v333, %v482
      %v485 = vpack.c.bf16 %v484, %v484
      %v486 = vld [vmem:[%s3] sm:$0xf]
      %v487 = vld [vmem:[%s3 + $0x4] sm:$0xf]
      %v488 = vld [vmem:[%s3 + $0x8] sm:$0xf]
      %v489 = vld [vmem:[%s3 + $0xc] sm:$0xf]
      %491 = vrot.lane.b32.xlu0 %v485, 32
      %v492 = vpop.permute.xlu0 %491
      %v497 = vunpack.c.l.b16 %v486
      %v498 = vunpack.c.l.b16 %v487
      %v499 = vunpack.c.l.b16 %v488
      %v500 = vunpack.c.l.b16 %v489
      %v501 = vpack.c.b16 %v498, %v497
      %v502 = vpack.c.b16 %v500, %v499
      %v506 = vsel %vm360, %v492, 0
      %508 = vmatprep.subr.bf16.mxu0 0
      %509 = vmatpush1.bf16.msra.mxu0 %v501
      %510 = vmatprep.subr.bf16.mxu0 0
      %511 = vmatpush1.bf16.msra.mxu0 %v502
      %512 = vmatprep.subr.bf16.mxu0 0
      %513 = vmatpush1.bf16.msra.mxu0 0
      %514 = vmatprep.subr.bf16.mxu0 0
      %515 = vmatpush1.bf16.msra.mxu0 0
      %516 = vmatprep.subr.bf16.mxu0 0
      %517 = vmatpush1.bf16.msra.mxu0 0
      %518 = vmatprep.subr.bf16.mxu0 0
      %519 = vmatpush1.bf16.msra.mxu0 0
      %520 = vmatprep.subr.bf16.mxu0 0
      %521 = vmatpush1.bf16.msra.mxu0 0
      %522 = vmatprep.subr.bf16.mxu0 0
      %523 = vmatpush1.bf16.msra.mxu0 0
      %524 = vmatprep.subr.bf16.mxu0 0
      %525 = vmatpush1.bf16.msra.mxu0 0
      %526 = vmatprep.subr.bf16.mxu0 0
      %527 = vmatpush1.bf16.msra.mxu0 0
      %528 = vmatprep.subr.bf16.mxu0 0
      %529 = vmatpush1.bf16.msra.mxu0 0
      %530 = vmatprep.subr.bf16.mxu0 0
      %531 = vmatpush1.bf16.msra.mxu0 0
      %532 = vmatprep.subr.bf16.mxu0 0
      %533 = vmatpush1.bf16.msra.mxu0 0
      %534 = vmatprep.subr.bf16.mxu0 0
      %535 = vmatpush1.bf16.msra.mxu0 0
      %536 = vmatprep.subr.bf16.mxu0 0
      %537 = vmatpush1.bf16.msra.mxu0 0
      %538 = vmatprep.subr.bf16.mxu0 0
      %539 = vmatpush1.bf16.msra.mxu0 0
      %540 = vmatprep.mubr.bf16.mxu0 0
      %541 = vmatmul.mubr.bf16.gmra.mrb[0].mxu0 %v506
      %v542 = vpop.f32.mrb[0].mxu0
      %v543 = vadd.f32 0.0, %v542
      %v544 = vpop.f32.mrb[0].mxu0
      %v545 = vpop.f32.mrb[0].mxu0
      %v546 = vpop.f32.mrb[0].mxu0
      %547 = vdwg.mxu0
      %v548 = vlaneseq
      %v549 = vshrl.u32 %v548, 7
      %v550 = vlaneseq
      %v551 = vand.u32 %v550, 127
      %vm552 = vcmp.ge.s32.totalorder %v549, %v551
      %v553 = vpack.c.bf16 %v543, %v543
      %555 = vrot.lane.b32.xlu0 %v553, 96
      %v556 = vpop.permute.xlu0 %555
      %v558 = vsel %vm360, %v553, 0
      %v561 = vsel %vm360, %v556, 0
      %563 = vmatprep.subr.bf16.mxu0 0
      %564 = vmatpush1.bf16.xpose.msra.mxu0 %v561
      %565 = vmatprep.subr.bf16.mxu0 0
      %566 = vmatpush1.bf16.xpose.msra.mxu0 0
      %567 = vmatprep.subr.bf16.mxu0 0
      %568 = vmatpush1.bf16.xpose.msra.mxu0 0
      %569 = vmatprep.subr.bf16.mxu0 0
      %570 = vmatpush1.bf16.xpose.msra.mxu0 0
      %571 = vmatprep.subr.bf16.mxu0 0
      %572 = vmatpush1.bf16.xpose.msra.mxu0 0
      %573 = vmatprep.subr.bf16.mxu0 0
      %574 = vmatpush1.bf16.xpose.msra.mxu0 0
      %575 = vmatprep.subr.bf16.mxu0 0
      %576 = vmatpush1.bf16.xpose.msra.mxu0 0
      %577 = vmatprep.subr.bf16.mxu0 0
      %578 = vmatpush1.bf16.xpose.msra.mxu0 0
      %579 = vmatprep.subr.bf16.mxu0 0
      %580 = vmatpush1.bf16.xpose.msra.mxu0 0
      %581 = vmatprep.subr.bf16.mxu0 0
      %582 = vmatpush1.bf16.xpose.msra.mxu0 0
      %583 = vmatprep.subr.bf16.mxu0 0
      %584 = vmatpush1.bf16.xpose.msra.mxu0 0
      %585 = vmatprep.subr.bf16.mxu0 0
      %586 = vmatpush1.bf16.xpose.msra.mxu0 0
      %587 = vmatprep.subr.bf16.mxu0 0
      %588 = vmatpush1.bf16.xpose.msra.mxu0 0
      %589 = vmatprep.subr.bf16.mxu0 0
      %590 = vmatpush1.bf16.xpose.msra.mxu0 0
      %591 = vmatprep.subr.bf16.mxu0 0
      %592 = vmatpush1.bf16.xpose.msra.mxu0 0
      %593 = vmatprep.subr.bf16.mxu0 0
      %594 = vmatpush1.bf16.xpose.msra.mxu0 0
      %595 = vmatprep.mubr.bf16.mxu0 0
      %596 = vmatmul.mubr.bf16.gmra.mrb[0].mxu0 %v558
      %v597 = vpop.f32.mrb[0].mxu0
      %v598 = vadd.f32 0.0, %v597
      %v599 = vpop.f32.mrb[0].mxu0
      %v600 = vpop.f32.mrb[0].mxu0
      %v601 = vpop.f32.mrb[0].mxu0
      %602 = vdwg.mxu0
      %v603 = vmul.f32 %v598, 0.17677669
      %v604 = vld [vmem:[%s327] sm:$0x1]
      %vm605 = vcmp.gt.f32.partialorder %v604, 0.5
      %v606 = vsel %vm605, 1, 0
      %v607 = vlaneseq
      %v608 = vshrl.u32 %v607, 7
      %v609 = vsub.s32 0, %v608
      %v610 = vrot.slane %v606, %v609
      %vm611 = vcmp.eq.s32.totalorder %v610, 1
      %vm612 = vmand %vm552, %vm611
      %v613 = vsel %vm612, %v603, -1e+09
      %vm614 = vcmask 64512
      %v615 = vsel %vm614, %v613, -inf
      %616 = vmax.xlane.f32.xlu0 %v615
      %v617 = vpop.xlane.xlu0 %616
      %v618 = vsub.f32 %v613, %v617
      %v619 = vmul.f32 %v618, 1.442695
      %v620 = vpow.pop %v619
      %v621 = vsel %vm614, %v620, 0.0
      %622 = vadd.xlane.f32.xlu0 %v621
      %v623 = vpop.xlane.xlu0 %622
      %v624 = vrcp.pop %v623
      %v625 = vmul.f32 %v620, %v624
      %v626 = vpack.c.bf16 %v625, %v625
      %627 = vrot.lane.b32.xlu0 %v553, 64
      %v628 = vpop.permute.xlu0 %627
      %v630 = vsel %vm614, %v626, 0
      %vm632 = vcmask 1043456
      %v634 = vsel %vm632, %v628, 0
      %636 = vmatprep.subr.bf16.mxu0 0
      %637 = vmatpush1.bf16.msra.mxu0 %v634
      %638 = vmatprep.subr.bf16.mxu0 0
      %639 = vmatpush1.bf16.msra.mxu0 0
      %640 = vmatprep.subr.bf16.mxu0 0
      %641 = vmatpush1.bf16.msra.mxu0 0
      %642 = vmatprep.subr.bf16.mxu0 0
      %643 = vmatpush1.bf16.msra.mxu0 0
      %644 = vmatprep.subr.bf16.mxu0 0
      %645 = vmatpush1.bf16.msra.mxu0 0
      %646 = vmatprep.subr.bf16.mxu0 0
      %647 = vmatpush1.bf16.msra.mxu0 0
      %648 = vmatprep.subr.bf16.mxu0 0
      %649 = vmatpush1.bf16.msra.mxu0 0
      %650 = vmatprep.subr.bf16.mxu0 0
      %651 = vmatpush1.bf16.msra.mxu0 0
      %652 = vmatprep.subr.bf16.mxu0 0
      %653 = vmatpush1.bf16.msra.mxu0 0
      %654 = vmatprep.subr.bf16.mxu0 0
      %655 = vmatpush1.bf16.msra.mxu0 0
      %656 = vmatprep.subr.bf16.mxu0 0
      %657 = vmatpush1.bf16.msra.mxu0 0
      %658 = vmatprep.subr.bf16.mxu0 0
      %659 = vmatpush1.bf16.msra.mxu0 0
      %660 = vmatprep.subr.bf16.mxu0 0
      %661 = vmatpush1.bf16.msra.mxu0 0
      %662 = vmatprep.subr.bf16.mxu0 0
      %663 = vmatpush1.bf16.msra.mxu0 0
      %664 = vmatprep.subr.bf16.mxu0 0
      %665 = vmatpush1.bf16.msra.mxu0 0
      %666 = vmatprep.subr.bf16.mxu0 0
      %667 = vmatpush1.bf16.msra.mxu0 0
      %668 = vmatprep.mubr.bf16.mxu0 0
      %669 = vmatmul.mubr.bf16.gmra.mrb[0].mxu0 %v630
      %v670 = vpop.f32.mrb[0].mxu0
      %v671 = vadd.f32 0.0, %v670
      %v672 = vpop.f32.mrb[0].mxu0
      %v673 = vpop.f32.mrb[0].mxu0
      %v674 = vpop.f32.mrb[0].mxu0
      %675 = vdwg.mxu0
      %v676 = vpack.c.bf16 %v671, %v671
      %v677 = vld [vmem:[%s4] sm:$0xf]
      %v678 = vld [vmem:[%s4 + $0x4] sm:$0xf]
      %v679 = vld [vmem:[%s4 + $0x8] sm:$0xf]
      %v680 = vld [vmem:[%s4 + $0xc] sm:$0xf]
      %v685 = vunpack.c.l.b16 %v677
      %v686 = vunpack.c.l.b16 %v678
      %v687 = vunpack.c.l.b16 %v679
      %v688 = vunpack.c.l.b16 %v680
      %v689 = vpack.c.b16 %v686, %v685
      %v690 = vpack.c.b16 %v688, %v687
      %v694 = vsel %vm360, %v676, 0
      %696 = vmatprep.subr.bf16.mxu0 0
      %697 = vmatpush1.bf16.msra.mxu0 %v689
      %698 = vmatprep.subr.bf16.mxu0 0
      %699 = vmatpush1.bf16.msra.mxu0 %v690
      %700 = vmatprep.subr.bf16.mxu0 0
      %701 = vmatpush1.bf16.msra.mxu0 0
      %702 = vmatprep.subr.bf16.mxu0 0
      %703 = vmatpush1.bf16.msra.mxu0 0
      %704 = vmatprep.subr.bf16.mxu0 0
      %705 = vmatpush1.bf16.msra.mxu0 0
      %706 = vmatprep.subr.bf16.mxu0 0
      %707 = vmatpush1.bf16.msra.mxu0 0
      %708 = vmatprep.subr.bf16.mxu0 0
      %709 = vmatpush1.bf16.msra.mxu0 0
      %710 = vmatprep.subr.bf16.mxu0 0
      %711 = vmatpush1.bf16.msra.mxu0 0
      %712 = vmatprep.subr.bf16.mxu0 0
      %713 = vmatpush1.bf16.msra.mxu0 0
      %714 = vmatprep.subr.bf16.mxu0 0
      %715 = vmatpush1.bf16.msra.mxu0 0
      %716 = vmatprep.subr.bf16.mxu0 0
      %717 = vmatpush1.bf16.msra.mxu0 0
      %718 = vmatprep.subr.bf16.mxu0 0
      %719 = vmatpush1.bf16.msra.mxu0 0
      %720 = vmatprep.subr.bf16.mxu0 0
      %721 = vmatpush1.bf16.msra.mxu0 0
      %722 = vmatprep.subr.bf16.mxu0 0
      %723 = vmatpush1.bf16.msra.mxu0 0
      %724 = vmatprep.subr.bf16.mxu0 0
      %725 = vmatpush1.bf16.msra.mxu0 0
      %726 = vmatprep.subr.bf16.mxu0 0
      %727 = vmatpush1.bf16.msra.mxu0 0
      %728 = vmatprep.mubr.bf16.mxu0 0
      %729 = vmatmul.mubr.bf16.gmra.mrb[0].mxu0 %v694
      %v730 = vpop.f32.mrb[0].mxu0
      %v731 = vadd.f32 0.0, %v730
      %v732 = vpop.f32.mrb[0].mxu0
      %v733 = vpop.f32.mrb[0].mxu0
      %v734 = vpop.f32.mrb[0].mxu0
      %735 = vdwg.mxu0
      %v736 = vmul.f32 %v731, %v482
      %v737 = vrot.slane %v736, 7
      %vm738 = vcmp.lt.s32.totalorder %v549, 0
      %v739 = vsub.s32 0, %v549
      %v740 = vsel %vm738, %v739, %v549
      %v741 = vshrl.u32 %v740, 3
      %v742 = vand.u32 %v740, 7
      %v743 = vsub.s32 0, %v742
      %v744 = vsel %vm738, %v743, %v742
      %vm745 = vcmp.ne.s32.totalorder %v744, 0
      %vm746 = vcmp.lt.s32.totalorder %v744, 0
      %vm747 = vmand %vm746, %vm745
      %v748 = vadd.s32 %v744, 8
      %v749 = vsel %vm747, %v748, %v744
      %vm750 = vcmp.eq.s32.totalorder %v749, 0
      %v751 = vsel %vm750, 1, 0
      %vm752 = vcmp.eq.s32.totalorder %v751, 1
      %v753 = vsel %vm752, 0.0, %v737
      %v754 = vpack.c.bf16 %v736, %v753
      %v755 = vld [vmem:[%s6] sm:$0xf]
      %v756 = vld [vmem:[%s6 + $0x4] sm:$0xf]
      %v757 = vld [vmem:[%s6 + $0x8] sm:$0xf]
      %v758 = vld [vmem:[%s6 + $0xc] sm:$0xf]
      %v763 = vunpack.c.l.b16 %v755
      %v764 = vunpack.c.l.b16 %v756
      %v765 = vunpack.c.l.b16 %v757
      %v766 = vunpack.c.l.b16 %v758
      %v767 = vpack.c.b16 %v764, %v763
      %v768 = vpack.c.b16 %v766, %v765
      %v772 = vsel %vm360, %v754, 0
      %774 = vmatprep.subr.bf16.mxu0 0
      %775 = vmatpush1.bf16.msra.mxu0 %v767
      %776 = vmatprep.subr.bf16.mxu0 0
      %777 = vmatpush1.bf16.msra.mxu0 %v768
      %778 = vmatprep.subr.bf16.mxu0 0
      %779 = vmatpush1.bf16.msra.mxu0 0
      %780 = vmatprep.subr.bf16.mxu0 0
      %781 = vmatpush1.bf16.msra.mxu0 0
      %782 = vmatprep.subr.bf16.mxu0 0
      %783 = vmatpush1.bf16.msra.mxu0 0
      %784 = vmatprep.subr.bf16.mxu0 0
      %785 = vmatpush1.bf16.msra.mxu0 0
      %786 = vmatprep.subr.bf16.mxu0 0
      %787 = vmatpush1.bf16.msra.mxu0 0
      %788 = vmatprep.subr.bf16.mxu0 0
      %789 = vmatpush1.bf16.msra.mxu0 0
      %790 = vmatprep.subr.bf16.mxu0 0
      %791 = vmatpush1.bf16.msra.mxu0 0
      %792 = vmatprep.subr.bf16.mxu0 0
      %793 = vmatpush1.bf16.msra.mxu0 0
      %794 = vmatprep.subr.bf16.mxu0 0
      %795 = vmatpush1.bf16.msra.mxu0 0
      %796 = vmatprep.subr.bf16.mxu0 0
      %797 = vmatpush1.bf16.msra.mxu0 0
      %798 = vmatprep.subr.bf16.mxu0 0
      %799 = vmatpush1.bf16.msra.mxu0 0
      %800 = vmatprep.subr.bf16.mxu0 0
      %801 = vmatpush1.bf16.msra.mxu0 0
      %802 = vmatprep.subr.bf16.mxu0 0
      %803 = vmatpush1.bf16.msra.mxu0 0
      %804 = vmatprep.subr.bf16.mxu0 0
      %805 = vmatpush1.bf16.msra.mxu0 0
      %806 = vmatprep.mubr.bf16.mxu0 0
      %807 = vmatmul.mubr.bf16.gmra.mrb[0].mxu0 %v772
      %v808 = vpop.f32.mrb[0].mxu0
      %v809 = vadd.f32 0.0, %v808
      %v810 = vpop.f32.mrb[0].mxu0
      %v811 = vpop.f32.mrb[0].mxu0
      %v812 = vadd.f32 0.0, %v811
      %v813 = vpop.f32.mrb[0].mxu0
      %814 = vdwg.mxu0
      %v815 = vpack.c.bf16 %v736, %v736
      %v816 = vld [vmem:[%s5] sm:$0xf]
      %v817 = vld [vmem:[%s5 + $0x4] sm:$0xf]
      %v818 = vld [vmem:[%s5 + $0x8] sm:$0xf]
      %v819 = vld [vmem:[%s5 + $0xc] sm:$0xf]
      %v824 = vunpack.c.l.b16 %v816
      %v825 = vunpack.c.l.b16 %v817
      %v826 = vunpack.c.l.b16 %v818
      %v827 = vunpack.c.l.b16 %v819
      %v828 = vpack.c.b16 %v825, %v824
      %v829 = vpack.c.b16 %v827, %v826
      %v833 = vsel %vm360, %v815, 0
      %835 = vmatprep.subr.bf16.mxu0 0
      %836 = vmatpush1.bf16.msra.mxu0 %v828
      %837 = vmatprep.subr.bf16.mxu0 0
      %838 = vmatpush1.bf16.msra.mxu0 %v829
      %839 = vmatprep.subr.bf16.mxu0 0
      %840 = vmatpush1.bf16.msra.mxu0 0
      %841 = vmatprep.subr.bf16.mxu0 0
      %842 = vmatpush1.bf16.msra.mxu0 0
      %843 = vmatprep.subr.bf16.mxu0 0
      %844 = vmatpush1.bf16.msra.mxu0 0
      %845 = vmatprep.subr.bf16.mxu0 0
      %846 = vmatpush1.bf16.msra.mxu0 0
      %847 = vmatprep.subr.bf16.mxu0 0
      %848 = vmatpush1.bf16.msra.mxu0 0
      %849 = vmatprep.subr.bf16.mxu0 0
      %850 = vmatpush1.bf16.msra.mxu0 0
      %851 = vmatprep.subr.bf16.mxu0 0
      %852 = vmatpush1.bf16.msra.mxu0 0
      %853 = vmatprep.subr.bf16.mxu0 0
      %854 = vmatpush1.bf16.msra.mxu0 0
      %855 = vmatprep.subr.bf16.mxu0 0
      %856 = vmatpush1.bf16.msra.mxu0 0
      %857 = vmatprep.subr.bf16.mxu0 0
      %858 = vmatpush1.bf16.msra.mxu0 0
      %859 = vmatprep.subr.bf16.mxu0 0
      %860 = vmatpush1.bf16.msra.mxu0 0
      %861 = vmatprep.subr.bf16.mxu0 0
      %862 = vmatpush1.bf16.msra.mxu0 0
      %863 = vmatprep.subr.bf16.mxu0 0
      %864 = vmatpush1.bf16.msra.mxu0 0
      %865 = vmatprep.subr.bf16.mxu0 0
      %866 = vmatpush1.bf16.msra.mxu0 0
      %867 = vmatprep.mubr.bf16.mxu0 0
      %868 = vmatmul.mubr.bf16.gmra.mrb[0].mxu0 %v833
      %v869 = vpop.f32.mrb[0].mxu0
      %v870 = vadd.f32 0.0, %v869
      %v871 = vpop.f32.mrb[0].mxu0
      %v872 = vpop.f32.mrb[0].mxu0
      %v873 = vpop.f32.mrb[0].mxu0
      %874 = vdwg.mxu0
      %v875 = vmul.f32 %v466, 0.17677669
      %v876 = vmul.f32 %v875, %v809
      %v877 = vsel %vm360, %v876, 0.0
      %878 = vadd.xlane.f32.xlu0 %v877
      %v879 = vpop.xlane.xlu0 %878
      %v880 = vmul.f32 %v875, %v402
      %v881 = vsel %vm360, %v880, 0.0
      %882 = vadd.xlane.f32.xlu0 %v881
      %v883 = vpop.xlane.xlu0 %882
      %vm884 = vcmask 7168
      %v885 = vsel %vm884, %v879, %v883
      %vm886 = vcmask 15360
      %v887 = vsel %vm886, %v885, -inf
      %888 = vmax.xlane.f32.xlu0 %v887
      %v889 = vpop.xlane.xlu0 %888
      %v890 = vsub.f32 %v885, %v889
      %v891 = vmul.f32 %v890, 1.442695
      %v892 = vpow.pop %v891
      %v893 = vsel %vm886, %v892, 0.0
      %894 = vadd.xlane.f32.xlu0 %v893
      %v895 = vpop.xlane.xlu0 %894
      %v896 = vrcp.pop %v895
      %v897 = vmul.f32 %v892, %v896
      %899 = vset.pattern.permute.xlu0 0
      %900 = vperm.xlu0 %899, %v897
      %v901 = vpop.permute.xlu0 %900
      %v903 = vmul.f32 %v901, %v809
      %904 = vset.pattern.permute.xlu0 1
      %905 = vperm.xlu0 %904, %v897
      %v906 = vpop.permute.xlu0 %905
      %v908 = vmul.f32 %v906, %v402
      %v909 = vadd.f32 %v903, %v908
      %v910 = vmul.f32 %v469, 0.17677669
      %v911 = vmul.f32 %v910, %v809
      %v912 = vsel %vm360, %v911, 0.0
      %913 = vadd.xlane.f32.xlu0 %v912
      %v914 = vpop.xlane.xlu0 %913
      %v915 = vmul.f32 %v910, %v402
      %v916 = vsel %vm360, %v915, 0.0
      %917 = vadd.xlane.f32.xlu0 %v916
      %v918 = vpop.xlane.xlu0 %917
      %v919 = vmul.f32 %v910, %v405
      %v920 = vsel %vm360, %v919, 0.0
      %921 = vadd.xlane.f32.xlu0 %v920
      %v922 = vpop.xlane.xlu0 %921
      %v923 = vsel %vm884, %v914, %v918
      %v924 = vsel %vm886, %v923, %v922
      %vm925 = vcmask 23552
      %v926 = vsel %vm925, %v924, -inf
      %927 = vmax.xlane.f32.xlu0 %v926
      %v928 = vpop.xlane.xlu0 %927
      %v929 = vsub.f32 %v924, %v928
      %v930 = vmul.f32 %v929, 1.442695
      %v931 = vpow.pop %v930
      %v932 = vsel %vm925, %v931, 0.0
      %933 = vadd.xlane.f32.xlu0 %v932
      %v934 = vpop.xlane.xlu0 %933
      %v935 = vrcp.pop %v934
      %v936 = vmul.f32 %v931, %v935
      %938 = vset.pattern.permute.xlu0 0
      %939 = vperm.xlu0 %938, %v936
      %v940 = vpop.permute.xlu0 %939
      %v942 = vmul.f32 %v940, %v809
      %943 = vset.pattern.permute.xlu0 1
      %944 = vperm.xlu0 %943, %v936
      %v945 = vpop.permute.xlu0 %944
      %v947 = vmul.f32 %v945, %v402
      %v948 = vadd.f32 %v942, %v947
      %949 = vset.pattern.permute.xlu0 2
      %950 = vperm.xlu0 %949, %v936
      %v951 = vpop.permute.xlu0 %950
      %v953 = vmul.f32 %v951, %v405
      %v954 = vadd.f32 %v948, %v953
      %v955 = vmul.f32 %v474, 0.17677669
      %v956 = vmul.f32 %v955, %v809
      %v957 = vsel %vm360, %v956, 0.0
      %958 = vadd.xlane.f32.xlu0 %v957
      %v959 = vpop.xlane.xlu0 %958
      %v960 = vmul.f32 %v955, %v402
      %v961 = vsel %vm360, %v960, 0.0
      %962 = vadd.xlane.f32.xlu0 %v961
      %v963 = vpop.xlane.xlu0 %962
      %v964 = vmul.f32 %v955, %v405
      %v965 = vsel %vm360, %v964, 0.0
      %966 = vadd.xlane.f32.xlu0 %v965
      %v967 = vpop.xlane.xlu0 %966
      %v968 = vmul.f32 %v955, %v410
      %v969 = vsel %vm360, %v968, 0.0
      %970 = vadd.xlane.f32.xlu0 %v969
      %v971 = vpop.xlane.xlu0 %970
      %v972 = vsel %vm884, %v959, %v963
      %v973 = vsel %vm886, %v972, %v967
      %v974 = vsel %vm925, %v973, %v971
      %vm975 = vcmask 31744
      %v976 = vsel %vm975, %v974, -inf
      %977 = vmax.xlane.f32.xlu0 %v976
      %v978 = vpop.xlane.xlu0 %977
      %v979 = vsub.f32 %v974, %v978
      %v980 = vmul.f32 %v979, 1.442695
      %v981 = vpow.pop %v980
      %v982 = vsel %vm975, %v981, 0.0
      %983 = vadd.xlane.f32.xlu0 %v982
      %v984 = vpop.xlane.xlu0 %983
      %v985 = vrcp.pop %v984
      %v986 = vmul.f32 %v981, %v985
      %988 = vset.pattern.permute.xlu0 0
      %989 = vperm.xlu0 %988, %v986
      %v990 = vpop.permute.xlu0 %989
      %v992 = vmul.f32 %v990, %v809
      %993 = vset.pattern.permute.xlu0 1
      %994 = vperm.xlu0 %993, %v986
      %v995 = vpop.permute.xlu0 %994
      %v997 = vmul.f32 %v995, %v402
      %v998 = vadd.f32 %v992, %v997
      %999 = vset.pattern.permute.xlu0 2
      %1000 = vperm.xlu0 %999, %v986
      %v1001 = vpop.permute.xlu0 %1000
      %v1003 = vmul.f32 %v1001, %v405
      %v1004 = vadd.f32 %v998, %v1003
      %1005 = vset.pattern.permute.xlu0 3
      %1006 = vperm.xlu0 %1005, %v986
      %v1007 = vpop.permute.xlu0 %1006
      %v1009 = vmul.f32 %v1007, %v410
      %v1010 = vadd.f32 %v1004, %v1009
      %v1011 = vmul.f32 %v870, 0.17677669
      %v1012 = vmul.f32 %v1011, %v809
      %v1013 = vsel %vm360, %v1012, 0.0
      %1014 = vadd.xlane.f32.xlu0 %v1013
      %v1015 = vpop.xlane.xlu0 %1014
      %v1016 = vmul.f32 %v1011, %v402
      %v1017 = vsel %vm360, %v1016, 0.0
      %1018 = vadd.xlane.f32.xlu0 %v1017
      %v1019 = vpop.xlane.xlu0 %1018
      %v1020 = vmul.f32 %v1011, %v405
      %v1021 = vsel %vm360, %v1020, 0.0
      %1022 = vadd.xlane.f32.xlu0 %v1021
      %v1023 = vpop.xlane.xlu0 %1022
      %v1024 = vmul.f32 %v1011, %v410
      %v1025 = vsel %vm360, %v1024, 0.0
      %1026 = vadd.xlane.f32.xlu0 %v1025
      %v1027 = vpop.xlane.xlu0 %1026
      %v1028 = vmul.f32 %v1011, %v812
      %v1029 = vsel %vm360, %v1028, 0.0
      %1030 = vadd.xlane.f32.xlu0 %v1029
      %v1031 = vpop.xlane.xlu0 %1030
      %v1032 = vsel %vm884, %v1015, %v1019
      %v1033 = vsel %vm886, %v1032, %v1023
      %v1034 = vsel %vm925, %v1033, %v1027
      %v1035 = vsel %vm975, %v1034, %v1031
      %vm1036 = vcmask 39936
      %v1037 = vsel %vm1036, %v1035, -inf
      %1038 = vmax.xlane.f32.xlu0 %v1037
      %v1039 = vpop.xlane.xlu0 %1038
      %v1040 = vsub.f32 %v1035, %v1039
      %v1041 = vmul.f32 %v1040, 1.442695
      %v1042 = vpow.pop %v1041
      %v1043 = vsel %vm1036, %v1042, 0.0
      %1044 = vadd.xlane.f32.xlu0 %v1043
      %v1045 = vpop.xlane.xlu0 %1044
      %v1046 = vrcp.pop %v1045
      %v1047 = vmul.f32 %v1042, %v1046
      %1049 = vset.pattern.permute.xlu0 0
      %1050 = vperm.xlu0 %1049, %v1047
      %v1051 = vpop.permute.xlu0 %1050
      %v1053 = vmul.f32 %v1051, %v809
      %1054 = vset.pattern.permute.xlu0 1
      %1055 = vperm.xlu0 %1054, %v1047
      %v1056 = vpop.permute.xlu0 %1055
      %v1058 = vmul.f32 %v1056, %v402
      %v1059 = vadd.f32 %v1053, %v1058
      %1060 = vset.pattern.permute.xlu0 2
      %1061 = vperm.xlu0 %1060, %v1047
      %v1062 = vpop.permute.xlu0 %1061
      %v1064 = vmul.f32 %v1062, %v405
      %v1065 = vadd.f32 %v1059, %v1064
      %1066 = vset.pattern.permute.xlu0 3
      %1067 = vperm.xlu0 %1066, %v1047
      %v1068 = vpop.permute.xlu0 %1067
      %v1070 = vmul.f32 %v1068, %v410
      %v1071 = vadd.f32 %v1065, %v1070
      %1072 = vset.pattern.permute.xlu0 4
      %1073 = vperm.xlu0 %1072, %v1047
      %v1074 = vpop.permute.xlu0 %1073
      %v1076 = vmul.f32 %v1074, %v812
      %v1077 = vadd.f32 %v1071, %v1076
      %v1078 = vpack.c.bf16 %v954, %v909
      %v1079 = vpack.c.bf16 %v1077, %v1010
      %v1080 = vld [vmem:[%s7] sm:$0xf]
      %v1081 = vld [vmem:[%s7 + $0x4] sm:$0xf]
      %v1082 = vld [vmem:[%s7 + $0x8] sm:$0xf]
      %v1083 = vld [vmem:[%s7 + $0xc] sm:$0xf]
      %1086 = vrot.lane.b32.xlu0 %v1078, 96
      %v1087 = vpop.permute.xlu0 %1086
      %1088 = vrot.lane.b32.xlu0 %v1079, 96
      %v1089 = vpop.permute.xlu0 %1088
      %v1094 = vunpack.c.l.b16 %v1080
      %v1095 = vunpack.c.l.b16 %v1081
      %v1096 = vunpack.c.l.b16 %v1082
      %v1097 = vunpack.c.l.b16 %v1083
      %v1098 = vpack.c.b16 %v1095, %v1094
      %v1099 = vpack.c.b16 %v1097, %v1096
      %v1103 = vsel %vm360, %v1087, 0
      %v1106 = vsel %vm360, %v1089, 0
      %1108 = vmatprep.subr.bf16.mxu0 0
      %1109 = vmatpush1.bf16.msra.mxu0 %v1098
      %1110 = vmatprep.subr.bf16.mxu0 0
      %1111 = vmatpush1.bf16.msra.mxu0 %v1099
      %1112 = vmatprep.subr.bf16.mxu0 0
      %1113 = vmatpush1.bf16.msra.mxu0 0
      %1114 = vmatprep.subr.bf16.mxu0 0
      %1115 = vmatpush1.bf16.msra.mxu0 0
      %1116 = vmatprep.subr.bf16.mxu0 0
      %1117 = vmatpush1.bf16.msra.mxu0 0
      %1118 = vmatprep.subr.bf16.mxu0 0
      %1119 = vmatpush1.bf16.msra.mxu0 0
      %1120 = vmatprep.subr.bf16.mxu0 0
      %1121 = vmatpush1.bf16.msra.mxu0 0
      %1122 = vmatprep.subr.bf16.mxu0 0
      %1123 = vmatpush1.bf16.msra.mxu0 0
      %1124 = vmatprep.subr.bf16.mxu0 0
      %1125 = vmatpush1.bf16.msra.mxu0 0
      %1126 = vmatprep.subr.bf16.mxu0 0
      %1127 = vmatpush1.bf16.msra.mxu0 0
      %1128 = vmatprep.subr.bf16.mxu0 0
      %1129 = vmatpush1.bf16.msra.mxu0 0
      %1130 = vmatprep.subr.bf16.mxu0 0
      %1131 = vmatpush1.bf16.msra.mxu0 0
      %1132 = vmatprep.subr.bf16.mxu0 0
      %1133 = vmatpush1.bf16.msra.mxu0 0
      %1134 = vmatprep.subr.bf16.mxu0 0
      %1135 = vmatpush1.bf16.msra.mxu0 0
      %1136 = vmatprep.subr.bf16.mxu0 0
      %1137 = vmatpush1.bf16.msra.mxu0 0
      %1138 = vmatprep.subr.bf16.mxu0 0
      %1139 = vmatpush1.bf16.msra.mxu0 0
      %1140 = vmatprep.mubr.bf16.mxu0 0
      %1141 = vmatmul.mubr.bf16.gmra.mrb[0].mxu0 %v1103
      %v1142 = vpop.f32.mrb[0].mxu0
      %v1143 = vadd.f32 0.0, %v1142
      %v1144 = vpop.f32.mrb[0].mxu0
      %v1145 = vpop.f32.mrb[0].mxu0
      %v1146 = vadd.f32 0.0, %v1145
      %v1147 = vpop.f32.mrb[0].mxu0
      %1148 = vmatprep.mubr.bf16.mxu0 0
      %1149 = vmatmul.mubr.bf16.gmra.mrb[0].mxu0 %v1106
      %v1150 = vpop.f32.mrb[0].mxu0
      %v1151 = vadd.f32 0.0, %v1150
      %v1152 = vpop.f32.mrb[0].mxu0
      %v1153 = vpop.f32.mrb[0].mxu0
      %v1154 = vadd.f32 0.0, %v1153
      %v1155 = vpop.f32.mrb[0].mxu0
      %1156 = vdwg.mxu0
      %1158 = vrot.lane.b32.xlu0 %v1146, 32
      %v1159 = vpop.permute.xlu0 %1158
      %1162 = vrot.lane.b32.xlu0 %v1151, 64
      %v1163 = vpop.permute.xlu0 %1162
      %1166 = vrot.lane.b32.xlu0 %v1154, 96
      %v1167 = vpop.permute.xlu0 %1166
      %v1169 = vsel %vm360, %v1143, %v1159
      %vm1170 = vcmask 523264
      %v1171 = vsel %vm1170, %v1169, %v1163
      %vm1172 = vcmask 785408
      %v1173 = vsel %vm1172, %v1171, %v1167
      %v1174 = vmul.f32 %v1173, %v482
      %1175 = vst [vmem:[%s331] sm:$0xff] %v1174
      %p1176 = scmp.lt.s32.totalorder %s19, 1
      %s1177 = scalar_select %p1176, %s19, 1
      %s1178 = smul.addr %s1177, 8
      %s1179 = scalar_lea.vmem %s8, %s1178
      // Predicated region
      $region53: #{structured_attention_forward.1} parent=51 // pred_check
        %p1180 = pneg %p220
      $region54: #{structured_attention_forward.1} parent=51 // pred_check_branch
        %1182 = sbr.rel (%p1180) target = $region56
      $region55: #{structured_attention_forward.1} parent=51 // pred_region
        _
      $region56: #{structured_attention_forward.1} parent=51 // pred_fallthru
        _
    $region52: #{structured_attention_forward.1} parent=5 // pred_fallthru
      _
    %p1183 = scmp.le.s32.totalorder 2, %s14
    // Predicated region
    $region57: #{structured_attention_forward.1} parent=5 // pred_check
      %p1184 = pneg %p1183
    $region58: #{structured_attention_forward.1} parent=5 // pred_check_branch
      %1186 = sbr.rel (%p1184) target = $region60
    $region59: #{structured_attention_forward.1} parent=5 // pred_region
      %s1187 = ssub.s32 %s14, 2
      // Predicated region
      $region61: #{structured_attention_forward.1} parent=59 // pred_check
        %p1188 = pneg %p226
      $region62: #{structured_attention_forward.1} parent=59 // pred_check_branch
        %1190 = sbr.rel (%p1188) target = $region64
      $region63: #{structured_attention_forward.1} parent=59 // pred_region
        %p1191 = scmp.lt.s32.totalorder %s20, 1
        %s1192 = scalar_select %p1191, %s20, 1
        %s1193 = smul.addr %s1192, 8
        %s1194 = scalar_lea.vmem %s8, %s1193
      $region64: #{structured_attention_forward.1} parent=59 // pred_fallthru
        _
    $region60: #{structured_attention_forward.1} parent=5 // pred_fallthru
      _
  $region6: #{structured_attention_forward.1} parent=0 // loop_footer
    %s18 = sadd.s32 1, %s14
  $region7: #{structured_attention_forward.1} parent=0 // loop_footer_branch
    %13 = sbr.rel target = $region3
  $region8: #{structured_attention_forward.1} parent=0 // loop_exit
    _

</llo_original>
